<compile_context>
chip_gen: v5e
topology: v5e:2x2
jax: 0.10.0
libtpu: 0.0.40
codegen_flags: <defaults>
</compile_context>

<pallas_src>
import functools

import numpy as np
import jax
import jax.numpy as jnp
from jax import lax
from jax.experimental import pallas as pl
from jax.experimental.pallas import tpu as pltpu

EPS = 1e-5


# ----------------------------------------------------------------------------- kernel
def _fcn_kernel(x_ref, w1_ref, g1_ref, be1_ref,
                w2_ref, g2_ref, be2_ref,
                w3_ref, g3_ref, be3_ref,
                wfc_ref, bfc_ref, out_ref, *, B, L, Lp):
    R = B * Lp
    n_valid = float(B * L)

    # time index within each batch element, as an (R, 1) int column
    t = lax.broadcasted_iota(jnp.int32, (R, 1), 0) % Lp
    vm = None if Lp == L else (t < L)          # valid-row mask (pad rows at t >= L)

    def tap_mask(v, d):
        # zero rows whose shifted source time (t + d) falls outside [0, Lp);
        # rows with source time in [L, Lp) are already zero by invariant.
        if d > 0:
            return jnp.where(t < (Lp - d), v, 0.0)
        if d < 0:
            return jnp.where(t >= (-d), v, 0.0)
        return v

    def shift_rows(v, d):
        # out[r] = v[r + d]; wrapped rows are removed by tap_mask afterwards.
        return v if d == 0 else pltpu.roll(v, (-d) % R, axis=0)

    def bn_relu(h, gamma, beta):
        # training-mode BatchNorm folded into a per-channel affine (one-pass stats),
        # then ReLU; pad rows are re-zeroed to keep the zero-row invariant.
        hm = h if vm is None else jnp.where(vm, h, 0.0)
        s1 = jnp.sum(hm, axis=0, keepdims=True)
        s2 = jnp.sum(hm * hm, axis=0, keepdims=True)
        mu = s1 * (1.0 / n_valid)
        var = s2 * (1.0 / n_valid) - mu * mu
        scale = gamma * lax.rsqrt(var + EPS)            # EUP
        off = beta - mu * scale
        out = jnp.maximum(h * scale + off, 0.0)
        return out if vm is None else jnp.where(vm, out, 0.0)

    def conv_same(h, wcat_ref, K, cin, pad):
        # 'same' conv along time = sum over kernel taps of (row-shifted slab) @ W_tap.
        # Adjacent taps are grouped so each MXU matmul has up to a 256-deep contraction;
        # operands are bf16, accumulation f32.
        group = max(1, 256 // cin)
        acc = None
        for k0 in range(0, K, group):
            ks = range(k0, min(k0 + group, K))
            parts = [tap_mask(shift_rows(h, k - pad), k - pad).astype(jnp.bfloat16)
                     for k in ks]
            lhs = parts[0] if len(parts) == 1 else jnp.concatenate(parts, axis=1)
            w = wcat_ref[pl.ds(k0 * cin, len(parts) * cin), :]
            part = jnp.dot(lhs, w, preferred_element_type=jnp.float32)
            acc = part if acc is None else acc + part
        return acc

    # ---- conv1 (Cin=1, K=8, pad (4,3)): 8 VPU broadcast FMAs, no im2col ---------
    # conv biases are dropped throughout: training-mode BN subtracts the per-channel
    # mean right after, so an additive per-channel bias cancels exactly.
    x = x_ref[...]                                    # (R, 1) f32, zero on pad rows
    w1 = w1_ref[...]                                  # (8, 128) f32
    acc = jnp.zeros((R, 128), jnp.float32)
    for k in range(8):
        d = k - 4
        p = x * w1[k:k + 1, :]                        # (R,1) * (1,128) lane broadcast
        acc = acc + tap_mask(shift_rows(p, d), d)
    h = bn_relu(acc, g1_ref[...], be1_ref[...])                       # (R, 128)

    # ---- conv2 (128 -> 256, K=5, pad 2): taps paired into 256-deep bf16 matmuls -
    h = bn_relu(conv_same(h, w2_ref, K=5, cin=128, pad=2),
                g2_ref[...], be2_ref[...])                            # (R, 256)

    # ---- conv3 (256 -> 128, K=3, pad 1): each tap is already 256-deep -----------
    h = bn_relu(conv_same(h, w3_ref, K=3, cin=256, pad=1),
                g3_ref[...], be3_ref[...])                            # (R, 128)

    # ---- global average pool over time + FC head (tiny, kept f32) ---------------
    g = jnp.sum(h.reshape(B, Lp, 128), axis=1) * (1.0 / L)            # pad rows = 0
    out_ref[...] = jnp.dot(g, wfc_ref[...],
                           preferred_element_type=jnp.float32) + bfc_ref[...]


# ----------------------------------------------------------------------------- wrapper
def fcn_forward(x, params):
    """x: (B, 1, siglen) float32, NCW like torch.nn.Conv1d. Returns (B, n_targets)."""
    B, cin, L = x.shape
    assert cin == 1
    n_targets = params["Wfc"].shape[0]
    Lp = ((L + 7) // 8) * 8                   # time padded to a sublane multiple
    R = B * Lp

    # activations are 2-D (B*Lp, C) slabs; the raw signal enters as a single column.
    x_col = jnp.pad(x[:, 0, :].astype(jnp.float32),
                    ((0, 0), (0, Lp - L))).reshape(R, 1)

    # conv weights packed as (K*Cin, Cout) so a group of adjacent taps is a contiguous
    # row slice; conv2/conv3 weights are bf16 for the MXU fast path (conv1/fc stay f32).
    w1m = jnp.transpose(params["W1"][:, 0, :]).astype(jnp.float32)               # (8, 128)
    w2m = jnp.transpose(params["W2"], (2, 1, 0)).reshape(5 * 128, 256).astype(jnp.bfloat16)
    w3m = jnp.transpose(params["W3"], (2, 1, 0)).reshape(3 * 256, 128).astype(jnp.bfloat16)
    wfcm = jnp.transpose(params["Wfc"]).astype(jnp.float32)                      # (128, nt)

    row = lambda v: v.reshape(1, -1).astype(jnp.float32)
    args = (x_col, w1m, row(params["g1"]), row(params["be1"]),
            w2m, row(params["g2"]), row(params["be2"]),
            w3m, row(params["g3"]), row(params["be3"]),
            wfcm, row(params["bfc"]))

    def full_spec(shape):
        n = len(shape)
        return pl.BlockSpec(shape, lambda i, _n=n: (0,) * _n)

    # explicit VMEM budget: weights + a few f32/bf16 slabs per row, capped for v7x (64 MiB)
    weight_bytes = 4 * w1m.size + 2 * (w2m.size + w3m.size) + 4 * wfcm.size
    per_row_bytes = 4 * (1 + 128 + 256 + 256 + 128) + 2 * (256 + 256)
    vmem_limit = int(min(max(2 * weight_bytes + 3 * R * per_row_bytes + (4 << 20),
                             8 << 20), 64 << 20))

    kernel = functools.partial(_fcn_kernel, B=B, L=L, Lp=Lp)
    return pl.pallas_call(
        kernel,
        grid=(1,),
        in_specs=[full_spec(a.shape) for a in args],
        out_specs=full_spec((B, n_targets)),
        out_shape=jax.ShapeDtypeStruct((B, n_targets), jnp.float32),
        compiler_params=pltpu.CompilerParams(
            dimension_semantics=("arbitrary",),
            vmem_limit_bytes=vmem_limit),
    )(*args)


# ----------------------------------------------------------------------------- params
def init_params(key, n_targets):
    ks = jax.random.split(key, 14)
    p = {}
    p["W1"] = jax.random.normal(ks[0], (128, 1, 8), jnp.float32) * 0.25
    p["b1"] = jax.random.normal(ks[1], (128,), jnp.float32) * 0.1
    p["W2"] = jax.random.normal(ks[2], (256, 128, 5), jnp.float32) * 0.05
    p["b2"] = jax.random.normal(ks[3], (256,), jnp.float32) * 0.1
    p["W3"] = jax.random.normal(ks[4], (128, 256, 3), jnp.float32) * 0.05
    p["b3"] = jax.random.normal(ks[5], (128,), jnp.float32) * 0.1
    p["g1"] = 1.0 + 0.1 * jax.random.normal(ks[6], (128,), jnp.float32)
    p["be1"] = 0.1 * jax.random.normal(ks[7], (128,), jnp.float32)
    p["g2"] = 1.0 + 0.1 * jax.random.normal(ks[8], (256,), jnp.float32)
    p["be2"] = 0.1 * jax.random.normal(ks[9], (256,), jnp.float32)
    p["g3"] = 1.0 + 0.1 * jax.random.normal(ks[10], (128,), jnp.float32)
    p["be3"] = 0.1 * jax.random.normal(ks[11], (128,), jnp.float32)
    p["Wfc"] = jax.random.normal(ks[12], (n_targets, 128), jnp.float32) * 0.1
    p["bfc"] = jax.random.normal(ks[13], (n_targets,), jnp.float32) * 0.1
    return p


# --------------------------------------------------------------------- plain-JAX reference
def ref_forward(x, p, *, bf16_matmul=False):
    """Module semantics.  bf16_matmul=True mirrors the kernel's bf16 MXU inputs for
    conv2/conv3 (f32 accumulation) so the kernel structure can be checked tightly."""
    eps = 1e-5
    dn = ("NCH", "OIH", "NCH")
    prec = lax.Precision.HIGHEST

    def conv(h, w, pad):
        if bf16_matmul:
            return lax.conv_general_dilated(
                h.astype(jnp.bfloat16), w.astype(jnp.bfloat16), (1,), pad,
                dimension_numbers=dn, preferred_element_type=jnp.float32)
        return lax.conv_general_dilated(h, w, (1,), pad,
                                        dimension_numbers=dn, precision=prec)

    def bn_relu(h, g, b):
        mu = jnp.mean(h, axis=(0, 2), keepdims=True)
        var = jnp.mean(jnp.square(h - mu), axis=(0, 2), keepdims=True)
        return jnp.maximum(g[None, :, None] * (h - mu) / jnp.sqrt(var + eps)
                           + b[None, :, None], 0.0)

    h = jnp.pad(x, ((0, 0), (0, 0), (4, 3)))
    h = lax.conv_general_dilated(h, p["W1"], (1,), "VALID", dimension_numbers=dn,
                                 precision=prec) + p["b1"][None, :, None]
    h = bn_relu(h, p["g1"], p["be1"])
    h = conv(h, p["W2"], [(2, 2)]) + p["b2"][None, :, None]
    h = bn_relu(h, p["g2"], p["be2"])
    h = conv(h, p["W3"], [(1, 1)]) + p["b3"][None, :, None]
    h = bn_relu(h, p["g3"], p["be3"])
    g = jnp.mean(h, axis=2)
    return g @ p["Wfc"].T + p["bfc"][None, :]


# ----------------------------------------------------------------------------- main
if __name__ == "__main__":
    B, siglen, n_targets = 2, 16, 4
    key = jax.random.PRNGKey(0)
    pkey, xkey = jax.random.split(key)
    params = init_params(pkey, n_targets)
    x = jax.random.normal(xkey, (B, 1, siglen), jnp.float32)

    out = jax.block_until_ready(fcn_forward(x, params))
    assert out.shape == (B, n_targets)

    # 1) tight structural check vs a reference with matching bf16 conv2/conv3 matmuls
    ref_bf = jax.block_until_ready(ref_forward(x, params, bf16_matmul=True))
    # 2) looser semantic check vs the full-f32 reference (bf16 MXU inputs in the kernel)
    ref_hi = jax.block_until_ready(ref_forward(x, params, bf16_matmul=False))

    o = np.asarray(out)
    if not np.allclose(o, np.asarray(ref_bf), rtol=5e-3, atol=5e-3):
        raise AssertionError(f"mismatch vs bf16-matched reference:\nkernel={o}\nref={np.asarray(ref_bf)}")
    if not np.allclose(o, np.asarray(ref_hi), rtol=5e-2, atol=5e-2):
        raise AssertionError(f"mismatch vs f32 reference:\nkernel={o}\nref={np.asarray(ref_hi)}")
    print("KERNEL_OK")
</pallas_src>

<mosaic_0001>
module attributes {stable_mosaic.version = 11 : i64} {
  func.func @_fcn_kernel(%arg0: i32, %arg1: memref<32x1xf32, #tpu.memory_space<vmem>>, %arg2: memref<8x128xf32, #tpu.memory_space<vmem>>, %arg3: memref<1x128xf32, #tpu.memory_space<vmem>>, %arg4: memref<1x128xf32, #tpu.memory_space<vmem>>, %arg5: memref<640x256xbf16, #tpu.memory_space<vmem>>, %arg6: memref<1x256xf32, #tpu.memory_space<vmem>>, %arg7: memref<1x256xf32, #tpu.memory_space<vmem>>, %arg8: memref<768x128xbf16, #tpu.memory_space<vmem>>, %arg9: memref<1x128xf32, #tpu.memory_space<vmem>>, %arg10: memref<1x128xf32, #tpu.memory_space<vmem>>, %arg11: memref<128x4xf32, #tpu.memory_space<vmem>>, %arg12: memref<1x4xf32, #tpu.memory_space<vmem>>, %arg13: memref<2x4xf32, #tpu.memory_space<vmem>>) attributes {dimension_semantics = [#tpu.dimension_semantics<arbitrary>], iteration_bounds = array<i64: 1>, scalar_prefetch = 0 : i64, scratch_operands = 0 : i64, tpu.core_type = #tpu.core_type<tc>, window_params = [{pipeline_mode = #tpu.pipeline_mode<synchronous>, transform_indices = @transform_0, window_bounds = array<i64: 32, 1>}, {pipeline_mode = #tpu.pipeline_mode<synchronous>, transform_indices = @transform_1, window_bounds = array<i64: 8, 128>}, {pipeline_mode = #tpu.pipeline_mode<synchronous>, transform_indices = @transform_2, window_bounds = array<i64: 1, 128>}, {pipeline_mode = #tpu.pipeline_mode<synchronous>, transform_indices = @transform_3, window_bounds = array<i64: 1, 128>}, {pipeline_mode = #tpu.pipeline_mode<synchronous>, transform_indices = @transform_4, window_bounds = array<i64: 640, 256>}, {pipeline_mode = #tpu.pipeline_mode<synchronous>, transform_indices = @transform_5, window_bounds = array<i64: 1, 256>}, {pipeline_mode = #tpu.pipeline_mode<synchronous>, transform_indices = @transform_6, window_bounds = array<i64: 1, 256>}, {pipeline_mode = #tpu.pipeline_mode<synchronous>, transform_indices = @transform_7, window_bounds = array<i64: 768, 128>}, {pipeline_mode = #tpu.pipeline_mode<synchronous>, transform_indices = @transform_8, window_bounds = array<i64: 1, 128>}, {pipeline_mode = #tpu.pipeline_mode<synchronous>, transform_indices = @transform_9, window_bounds = array<i64: 1, 128>}, {pipeline_mode = #tpu.pipeline_mode<synchronous>, transform_indices = @transform_10, window_bounds = array<i64: 128, 4>}, {pipeline_mode = #tpu.pipeline_mode<synchronous>, transform_indices = @transform_11, window_bounds = array<i64: 1, 4>}, {pipeline_mode = #tpu.pipeline_mode<synchronous>, transform_indices = @transform_12, window_bounds = array<i64: 2, 4>}]} {
    %0 = tpu.iota {dimensions = array<i32: 0>} : vector<32x1xi32>
    %c16_i32 = arith.constant 16 : i32
    %c0_i32 = arith.constant 0 : i32
    %1 = arith.cmpi eq, %c16_i32, %c0_i32 : i32
    %c1_i32 = arith.constant 1 : i32
    %2 = arith.select %1, %c1_i32, %c16_i32 : i32
    %3 = vector.broadcast %2 : i32 to vector<32x1xi32>
    %4 = arith.remsi %0, %3 : vector<32x1xi32>
    %c0_i32_0 = arith.constant 0 : i32
    %5 = vector.broadcast %c0_i32_0 : i32 to vector<32x1xi32>
    %6 = arith.cmpi ne, %4, %5 : vector<32x1xi32>
    %c0_i32_1 = arith.constant 0 : i32
    %7 = vector.broadcast %c0_i32_1 : i32 to vector<32x1xi32>
    %8 = arith.cmpi slt, %4, %7 : vector<32x1xi32>
    %c0_i32_2 = arith.constant 0 : i32
    %9 = arith.cmpi slt, %2, %c0_i32_2 : i32
    %10 = vector.broadcast %9 : i1 to vector<32x1xi1>
    %11 = vector.broadcast %10 : vector<32x1xi1> to vector<32x1xi1>
    %12 = arith.xori %8, %11 : vector<32x1xi1>
    %13 = arith.andi %12, %6 : vector<32x1xi1>
    %14 = vector.broadcast %2 : i32 to vector<32x1xi32>
    %15 = arith.addi %4, %14 : vector<32x1xi32>
    %16 = arith.select %13, %15, %4 : vector<32x1xi1>, vector<32x1xi32>
    %c0 = arith.constant 0 : index
    %c0_3 = arith.constant 0 : index
    %17 = vector.load %arg1[%c0, %c0_3] : memref<32x1xf32, #tpu.memory_space<vmem>>, vector<32x1xf32>
    %c0_4 = arith.constant 0 : index
    %c0_5 = arith.constant 0 : index
    %18 = vector.load %arg2[%c0_4, %c0_5] : memref<8x128xf32, #tpu.memory_space<vmem>>, vector<8x128xf32>
    %cst = arith.constant 0.000000e+00 : f32
    %19 = vector.broadcast %cst : f32 to vector<32x128xf32>
    %20 = vector.extract_strided_slice %18 {offsets = [0, 0], sizes = [1, 128], strides = [1, 1]} : vector<8x128xf32> to vector<1x128xf32>
    %21 = vector.broadcast %17 : vector<32x1xf32> to vector<32x128xf32>
    %22 = vector.broadcast %20 : vector<1x128xf32> to vector<32x128xf32>
    %23 = arith.mulf %21, %22 : vector<32x128xf32>
    %c4_i32 = arith.constant 4 : i32
    %24 = tpu.dynamic_rotate %23 by %c4_i32 dim 0 : vector<32x128xf32>, i32 -> vector<32x128xf32>
    %c4_i32_6 = arith.constant 4 : i32
    %25 = vector.broadcast %c4_i32_6 : i32 to vector<32x1xi32>
    %26 = arith.cmpi sge, %16, %25 : vector<32x1xi32>
    %cst_7 = arith.constant 0.000000e+00 : f32
    %27 = vector.shape_cast %26 : vector<32x1xi1> to vector<32x1xi1>
    %28 = vector.broadcast %27 : vector<32x1xi1> to vector<32x128xi1>
    %29 = vector.broadcast %cst_7 : f32 to vector<32x128xf32>
    %30 = arith.select %28, %24, %29 : vector<32x128xi1>, vector<32x128xf32>
    %31 = arith.addf %19, %30 : vector<32x128xf32>
    %32 = vector.extract_strided_slice %18 {offsets = [1, 0], sizes = [1, 128], strides = [1, 1]} : vector<8x128xf32> to vector<1x128xf32>
    %33 = vector.broadcast %17 : vector<32x1xf32> to vector<32x128xf32>
    %34 = vector.broadcast %32 : vector<1x128xf32> to vector<32x128xf32>
    %35 = arith.mulf %33, %34 : vector<32x128xf32>
    %c3_i32 = arith.constant 3 : i32
    %36 = tpu.dynamic_rotate %35 by %c3_i32 dim 0 : vector<32x128xf32>, i32 -> vector<32x128xf32>
    %c3_i32_8 = arith.constant 3 : i32
    %37 = vector.broadcast %c3_i32_8 : i32 to vector<32x1xi32>
    %38 = arith.cmpi sge, %16, %37 : vector<32x1xi32>
    %cst_9 = arith.constant 0.000000e+00 : f32
    %39 = vector.shape_cast %38 : vector<32x1xi1> to vector<32x1xi1>
    %40 = vector.broadcast %39 : vector<32x1xi1> to vector<32x128xi1>
    %41 = vector.broadcast %cst_9 : f32 to vector<32x128xf32>
    %42 = arith.select %40, %36, %41 : vector<32x128xi1>, vector<32x128xf32>
    %43 = arith.addf %31, %42 : vector<32x128xf32>
    %44 = vector.extract_strided_slice %18 {offsets = [2, 0], sizes = [1, 128], strides = [1, 1]} : vector<8x128xf32> to vector<1x128xf32>
    %45 = vector.broadcast %17 : vector<32x1xf32> to vector<32x128xf32>
    %46 = vector.broadcast %44 : vector<1x128xf32> to vector<32x128xf32>
    %47 = arith.mulf %45, %46 : vector<32x128xf32>
    %c2_i32 = arith.constant 2 : i32
    %48 = tpu.dynamic_rotate %47 by %c2_i32 dim 0 : vector<32x128xf32>, i32 -> vector<32x128xf32>
    %c2_i32_10 = arith.constant 2 : i32
    %49 = vector.broadcast %c2_i32_10 : i32 to vector<32x1xi32>
    %50 = arith.cmpi sge, %16, %49 : vector<32x1xi32>
    %cst_11 = arith.constant 0.000000e+00 : f32
    %51 = vector.shape_cast %50 : vector<32x1xi1> to vector<32x1xi1>
    %52 = vector.broadcast %51 : vector<32x1xi1> to vector<32x128xi1>
    %53 = vector.broadcast %cst_11 : f32 to vector<32x128xf32>
    %54 = arith.select %52, %48, %53 : vector<32x128xi1>, vector<32x128xf32>
    %55 = arith.addf %43, %54 : vector<32x128xf32>
    %56 = vector.extract_strided_slice %18 {offsets = [3, 0], sizes = [1, 128], strides = [1, 1]} : vector<8x128xf32> to vector<1x128xf32>
    %57 = vector.broadcast %17 : vector<32x1xf32> to vector<32x128xf32>
    %58 = vector.broadcast %56 : vector<1x128xf32> to vector<32x128xf32>
    %59 = arith.mulf %57, %58 : vector<32x128xf32>
    %c1_i32_12 = arith.constant 1 : i32
    %60 = tpu.dynamic_rotate %59 by %c1_i32_12 dim 0 : vector<32x128xf32>, i32 -> vector<32x128xf32>
    %c1_i32_13 = arith.constant 1 : i32
    %61 = vector.broadcast %c1_i32_13 : i32 to vector<32x1xi32>
    %62 = arith.cmpi sge, %16, %61 : vector<32x1xi32>
    %cst_14 = arith.constant 0.000000e+00 : f32
    %63 = vector.shape_cast %62 : vector<32x1xi1> to vector<32x1xi1>
    %64 = vector.broadcast %63 : vector<32x1xi1> to vector<32x128xi1>
    %65 = vector.broadcast %cst_14 : f32 to vector<32x128xf32>
    %66 = arith.select %64, %60, %65 : vector<32x128xi1>, vector<32x128xf32>
    %67 = arith.addf %55, %66 : vector<32x128xf32>
    %68 = vector.extract_strided_slice %18 {offsets = [4, 0], sizes = [1, 128], strides = [1, 1]} : vector<8x128xf32> to vector<1x128xf32>
    %69 = vector.broadcast %17 : vector<32x1xf32> to vector<32x128xf32>
    %70 = vector.broadcast %68 : vector<1x128xf32> to vector<32x128xf32>
    %71 = arith.mulf %69, %70 : vector<32x128xf32>
    %72 = arith.addf %67, %71 : vector<32x128xf32>
    %73 = vector.extract_strided_slice %18 {offsets = [5, 0], sizes = [1, 128], strides = [1, 1]} : vector<8x128xf32> to vector<1x128xf32>
    %74 = vector.broadcast %17 : vector<32x1xf32> to vector<32x128xf32>
    %75 = vector.broadcast %73 : vector<1x128xf32> to vector<32x128xf32>
    %76 = arith.mulf %74, %75 : vector<32x128xf32>
    %c31_i32 = arith.constant 31 : i32
    %77 = tpu.dynamic_rotate %76 by %c31_i32 dim 0 : vector<32x128xf32>, i32 -> vector<32x128xf32>
    %c15_i32 = arith.constant 15 : i32
    %78 = vector.broadcast %c15_i32 : i32 to vector<32x1xi32>
    %79 = arith.cmpi slt, %16, %78 : vector<32x1xi32>
    %cst_15 = arith.constant 0.000000e+00 : f32
    %80 = vector.shape_cast %79 : vector<32x1xi1> to vector<32x1xi1>
    %81 = vector.broadcast %80 : vector<32x1xi1> to vector<32x128xi1>
    %82 = vector.broadcast %cst_15 : f32 to vector<32x128xf32>
    %83 = arith.select %81, %77, %82 : vector<32x128xi1>, vector<32x128xf32>
    %84 = arith.addf %72, %83 : vector<32x128xf32>
    %85 = vector.extract_strided_slice %18 {offsets = [6, 0], sizes = [1, 128], strides = [1, 1]} : vector<8x128xf32> to vector<1x128xf32>
    %86 = vector.broadcast %17 : vector<32x1xf32> to vector<32x128xf32>
    %87 = vector.broadcast %85 : vector<1x128xf32> to vector<32x128xf32>
    %88 = arith.mulf %86, %87 : vector<32x128xf32>
    %c30_i32 = arith.constant 30 : i32
    %89 = tpu.dynamic_rotate %88 by %c30_i32 dim 0 : vector<32x128xf32>, i32 -> vector<32x128xf32>
    %c14_i32 = arith.constant 14 : i32
    %90 = vector.broadcast %c14_i32 : i32 to vector<32x1xi32>
    %91 = arith.cmpi slt, %16, %90 : vector<32x1xi32>
    %cst_16 = arith.constant 0.000000e+00 : f32
    %92 = vector.shape_cast %91 : vector<32x1xi1> to vector<32x1xi1>
    %93 = vector.broadcast %92 : vector<32x1xi1> to vector<32x128xi1>
    %94 = vector.broadcast %cst_16 : f32 to vector<32x128xf32>
    %95 = arith.select %93, %89, %94 : vector<32x128xi1>, vector<32x128xf32>
    %96 = arith.addf %84, %95 : vector<32x128xf32>
    %97 = vector.extract_strided_slice %18 {offsets = [7, 0], sizes = [1, 128], strides = [1, 1]} : vector<8x128xf32> to vector<1x128xf32>
    %98 = vector.broadcast %17 : vector<32x1xf32> to vector<32x128xf32>
    %99 = vector.broadcast %97 : vector<1x128xf32> to vector<32x128xf32>
    %100 = arith.mulf %98, %99 : vector<32x128xf32>
    %c29_i32 = arith.constant 29 : i32
    %101 = tpu.dynamic_rotate %100 by %c29_i32 dim 0 : vector<32x128xf32>, i32 -> vector<32x128xf32>
    %c13_i32 = arith.constant 13 : i32
    %102 = vector.broadcast %c13_i32 : i32 to vector<32x1xi32>
    %103 = arith.cmpi slt, %16, %102 : vector<32x1xi32>
    %cst_17 = arith.constant 0.000000e+00 : f32
    %104 = vector.shape_cast %103 : vector<32x1xi1> to vector<32x1xi1>
    %105 = vector.broadcast %104 : vector<32x1xi1> to vector<32x128xi1>
    %106 = vector.broadcast %cst_17 : f32 to vector<32x128xf32>
    %107 = arith.select %105, %101, %106 : vector<32x128xi1>, vector<32x128xf32>
    %108 = arith.addf %96, %107 : vector<32x128xf32>
    %c0_18 = arith.constant 0 : index
    %c0_19 = arith.constant 0 : index
    %109 = vector.load %arg3[%c0_18, %c0_19] : memref<1x128xf32, #tpu.memory_space<vmem>>, vector<1x128xf32>
    %c0_20 = arith.constant 0 : index
    %c0_21 = arith.constant 0 : index
    %110 = vector.load %arg4[%c0_20, %c0_21] : memref<1x128xf32, #tpu.memory_space<vmem>>, vector<1x128xf32>
    %cst_22 = arith.constant dense<0.000000e+00> : vector<128xf32>
    %111 = vector.multi_reduction <add>, %108, %cst_22 [0] : vector<32x128xf32> to vector<128xf32>
    %112 = vector.shape_cast %111 : vector<128xf32> to vector<1x128xf32>
    %113 = arith.mulf %108, %108 : vector<32x128xf32>
    %cst_23 = arith.constant dense<0.000000e+00> : vector<128xf32>
    %114 = vector.multi_reduction <add>, %113, %cst_23 [0] : vector<32x128xf32> to vector<128xf32>
    %115 = vector.shape_cast %114 : vector<128xf32> to vector<1x128xf32>
    %cst_24 = arith.constant 3.125000e-02 : f32
    %116 = vector.broadcast %cst_24 : f32 to vector<1x128xf32>
    %117 = arith.mulf %112, %116 : vector<1x128xf32>
    %cst_25 = arith.constant 3.125000e-02 : f32
    %118 = vector.broadcast %cst_25 : f32 to vector<1x128xf32>
    %119 = arith.mulf %115, %118 : vector<1x128xf32>
    %120 = arith.mulf %117, %117 : vector<1x128xf32>
    %121 = arith.subf %119, %120 : vector<1x128xf32>
    %cst_26 = arith.constant 9.99999974E-6 : f32
    %122 = vector.broadcast %cst_26 : f32 to vector<1x128xf32>
    %123 = arith.addf %121, %122 : vector<1x128xf32>
    %124 = math.rsqrt %123 : vector<1x128xf32>
    %125 = arith.mulf %109, %124 : vector<1x128xf32>
    %126 = arith.mulf %117, %125 : vector<1x128xf32>
    %127 = arith.subf %110, %126 : vector<1x128xf32>
    %128 = vector.broadcast %125 : vector<1x128xf32> to vector<32x128xf32>
    %129 = arith.mulf %108, %128 : vector<32x128xf32>
    %130 = vector.broadcast %127 : vector<1x128xf32> to vector<32x128xf32>
    %131 = arith.addf %129, %130 : vector<32x128xf32>
    %cst_27 = arith.constant 0.000000e+00 : f32
    %132 = vector.broadcast %cst_27 : f32 to vector<32x128xf32>
    %133 = arith.maximumf %131, %132 : vector<32x128xf32>
    %c2_i32_28 = arith.constant 2 : i32
    %134 = tpu.dynamic_rotate %133 by %c2_i32_28 dim 0 : vector<32x128xf32>, i32 -> vector<32x128xf32>
    %c2_i32_29 = arith.constant 2 : i32
    %135 = vector.broadcast %c2_i32_29 : i32 to vector<32x1xi32>
    %136 = arith.cmpi sge, %16, %135 : vector<32x1xi32>
    %cst_30 = arith.constant 0.000000e+00 : f32
    %137 = vector.shape_cast %136 : vector<32x1xi1> to vector<32x1xi1>
    %138 = vector.broadcast %137 : vector<32x1xi1> to vector<32x128xi1>
    %139 = vector.broadcast %cst_30 : f32 to vector<32x128xf32>
    %140 = arith.select %138, %134, %139 : vector<32x128xi1>, vector<32x128xf32>
    %141 = arith.truncf %140 : vector<32x128xf32> to vector<32x128xbf16>
    %c1_i32_31 = arith.constant 1 : i32
    %142 = tpu.dynamic_rotate %133 by %c1_i32_31 dim 0 : vector<32x128xf32>, i32 -> vector<32x128xf32>
    %c1_i32_32 = arith.constant 1 : i32
    %143 = vector.broadcast %c1_i32_32 : i32 to vector<32x1xi32>
    %144 = arith.cmpi sge, %16, %143 : vector<32x1xi32>
    %cst_33 = arith.constant 0.000000e+00 : f32
    %145 = vector.shape_cast %144 : vector<32x1xi1> to vector<32x1xi1>
    %146 = vector.broadcast %145 : vector<32x1xi1> to vector<32x128xi1>
    %147 = vector.broadcast %cst_33 : f32 to vector<32x128xf32>
    %148 = arith.select %146, %142, %147 : vector<32x128xi1>, vector<32x128xf32>
    %149 = arith.truncf %148 : vector<32x128xf32> to vector<32x128xbf16>
    %150 = tpu.concatenate %141, %149 in 1 : vector<32x128xbf16>, vector<32x128xbf16> -> vector<32x256xbf16>
    %c0_34 = arith.constant 0 : index
    %c0_35 = arith.constant 0 : index
    %151 = vector.load %arg5[%c0_34, %c0_35] : memref<640x256xbf16, #tpu.memory_space<vmem>>, vector<256x256xbf16>
    %cst_36 = arith.constant dense<0.000000e+00> : vector<32x256xf32>
    %152 = tpu.matmul %150, %151, %cst_36 {dimension_numbers = #tpu.dot_dimension_numbers<[1], [0], [0], [1], [0, 0, 1, 1], [], []>} : vector<32x256xbf16>, vector<256x256xbf16>, vector<32x256xf32> -> vector<32x256xf32>
    %153 = arith.truncf %133 : vector<32x128xf32> to vector<32x128xbf16>
    %c31_i32_37 = arith.constant 31 : i32
    %154 = tpu.dynamic_rotate %133 by %c31_i32_37 dim 0 : vector<32x128xf32>, i32 -> vector<32x128xf32>
    %c15_i32_38 = arith.constant 15 : i32
    %155 = vector.broadcast %c15_i32_38 : i32 to vector<32x1xi32>
    %156 = arith.cmpi slt, %16, %155 : vector<32x1xi32>
    %cst_39 = arith.constant 0.000000e+00 : f32
    %157 = vector.shape_cast %156 : vector<32x1xi1> to vector<32x1xi1>
    %158 = vector.broadcast %157 : vector<32x1xi1> to vector<32x128xi1>
    %159 = vector.broadcast %cst_39 : f32 to vector<32x128xf32>
    %160 = arith.select %158, %154, %159 : vector<32x128xi1>, vector<32x128xf32>
    %161 = arith.truncf %160 : vector<32x128xf32> to vector<32x128xbf16>
    %162 = tpu.concatenate %153, %161 in 1 : vector<32x128xbf16>, vector<32x128xbf16> -> vector<32x256xbf16>
    %c256 = arith.constant 256 : index
    %c0_40 = arith.constant 0 : index
    %163 = vector.load %arg5[%c256, %c0_40] : memref<640x256xbf16, #tpu.memory_space<vmem>>, vector<256x256xbf16>
    %cst_41 = arith.constant dense<0.000000e+00> : vector<32x256xf32>
    %164 = tpu.matmul %162, %163, %cst_41 {dimension_numbers = #tpu.dot_dimension_numbers<[1], [0], [0], [1], [0, 0, 1, 1], [], []>} : vector<32x256xbf16>, vector<256x256xbf16>, vector<32x256xf32> -> vector<32x256xf32>
    %165 = arith.addf %152, %164 : vector<32x256xf32>
    %c30_i32_42 = arith.constant 30 : i32
    %166 = tpu.dynamic_rotate %133 by %c30_i32_42 dim 0 : vector<32x128xf32>, i32 -> vector<32x128xf32>
    %c14_i32_43 = arith.constant 14 : i32
    %167 = vector.broadcast %c14_i32_43 : i32 to vector<32x1xi32>
    %168 = arith.cmpi slt, %16, %167 : vector<32x1xi32>
    %cst_44 = arith.constant 0.000000e+00 : f32
    %169 = vector.shape_cast %168 : vector<32x1xi1> to vector<32x1xi1>
    %170 = vector.broadcast %169 : vector<32x1xi1> to vector<32x128xi1>
    %171 = vector.broadcast %cst_44 : f32 to vector<32x128xf32>
    %172 = arith.select %170, %166, %171 : vector<32x128xi1>, vector<32x128xf32>
    %173 = arith.truncf %172 : vector<32x128xf32> to vector<32x128xbf16>
    %c512 = arith.constant 512 : index
    %c0_45 = arith.constant 0 : index
    %174 = vector.load %arg5[%c512, %c0_45] : memref<640x256xbf16, #tpu.memory_space<vmem>>, vector<128x256xbf16>
    %cst_46 = arith.constant dense<0.000000e+00> : vector<32x256xf32>
    %175 = tpu.matmul %173, %174, %cst_46 {dimension_numbers = #tpu.dot_dimension_numbers<[1], [0], [0], [1], [0, 0, 1, 1], [], []>} : vector<32x128xbf16>, vector<128x256xbf16>, vector<32x256xf32> -> vector<32x256xf32>
    %176 = arith.addf %165, %175 : vector<32x256xf32>
    %c0_47 = arith.constant 0 : index
    %c0_48 = arith.constant 0 : index
    %177 = vector.load %arg6[%c0_47, %c0_48] : memref<1x256xf32, #tpu.memory_space<vmem>>, vector<1x256xf32>
    %c0_49 = arith.constant 0 : index
    %c0_50 = arith.constant 0 : index
    %178 = vector.load %arg7[%c0_49, %c0_50] : memref<1x256xf32, #tpu.memory_space<vmem>>, vector<1x256xf32>
    %cst_51 = arith.constant dense<0.000000e+00> : vector<256xf32>
    %179 = vector.multi_reduction <add>, %176, %cst_51 [0] : vector<32x256xf32> to vector<256xf32>
    %180 = vector.shape_cast %179 : vector<256xf32> to vector<1x256xf32>
    %181 = arith.mulf %176, %176 : vector<32x256xf32>
    %cst_52 = arith.constant dense<0.000000e+00> : vector<256xf32>
    %182 = vector.multi_reduction <add>, %181, %cst_52 [0] : vector<32x256xf32> to vector<256xf32>
    %183 = vector.shape_cast %182 : vector<256xf32> to vector<1x256xf32>
    %cst_53 = arith.constant 3.125000e-02 : f32
    %184 = vector.broadcast %cst_53 : f32 to vector<1x256xf32>
    %185 = arith.mulf %180, %184 : vector<1x256xf32>
    %cst_54 = arith.constant 3.125000e-02 : f32
    %186 = vector.broadcast %cst_54 : f32 to vector<1x256xf32>
    %187 = arith.mulf %183, %186 : vector<1x256xf32>
    %188 = arith.mulf %185, %185 : vector<1x256xf32>
    %189 = arith.subf %187, %188 : vector<1x256xf32>
    %cst_55 = arith.constant 9.99999974E-6 : f32
    %190 = vector.broadcast %cst_55 : f32 to vector<1x256xf32>
    %191 = arith.addf %189, %190 : vector<1x256xf32>
    %192 = math.rsqrt %191 : vector<1x256xf32>
    %193 = arith.mulf %177, %192 : vector<1x256xf32>
    %194 = arith.mulf %185, %193 : vector<1x256xf32>
    %195 = arith.subf %178, %194 : vector<1x256xf32>
    %196 = vector.broadcast %193 : vector<1x256xf32> to vector<32x256xf32>
    %197 = arith.mulf %176, %196 : vector<32x256xf32>
    %198 = vector.broadcast %195 : vector<1x256xf32> to vector<32x256xf32>
    %199 = arith.addf %197, %198 : vector<32x256xf32>
    %cst_56 = arith.constant 0.000000e+00 : f32
    %200 = vector.broadcast %cst_56 : f32 to vector<32x256xf32>
    %201 = arith.maximumf %199, %200 : vector<32x256xf32>
    %c1_i32_57 = arith.constant 1 : i32
    %202 = tpu.dynamic_rotate %201 by %c1_i32_57 dim 0 : vector<32x256xf32>, i32 -> vector<32x256xf32>
    %c1_i32_58 = arith.constant 1 : i32
    %203 = vector.broadcast %c1_i32_58 : i32 to vector<32x1xi32>
    %204 = arith.cmpi sge, %16, %203 : vector<32x1xi32>
    %cst_59 = arith.constant 0.000000e+00 : f32
    %205 = vector.shape_cast %204 : vector<32x1xi1> to vector<32x1xi1>
    %206 = vector.broadcast %205 : vector<32x1xi1> to vector<32x256xi1>
    %207 = vector.broadcast %cst_59 : f32 to vector<32x256xf32>
    %208 = arith.select %206, %202, %207 : vector<32x256xi1>, vector<32x256xf32>
    %209 = arith.truncf %208 : vector<32x256xf32> to vector<32x256xbf16>
    %c0_60 = arith.constant 0 : index
    %c0_61 = arith.constant 0 : index
    %210 = vector.load %arg8[%c0_60, %c0_61] : memref<768x128xbf16, #tpu.memory_space<vmem>>, vector<256x128xbf16>
    %cst_62 = arith.constant dense<0.000000e+00> : vector<32x128xf32>
    %211 = tpu.matmul %209, %210, %cst_62 {dimension_numbers = #tpu.dot_dimension_numbers<[1], [0], [0], [1], [0, 0, 1, 1], [], []>} : vector<32x256xbf16>, vector<256x128xbf16>, vector<32x128xf32> -> vector<32x128xf32>
    %212 = arith.truncf %201 : vector<32x256xf32> to vector<32x256xbf16>
    %c256_63 = arith.constant 256 : index
    %c0_64 = arith.constant 0 : index
    %213 = vector.load %arg8[%c256_63, %c0_64] : memref<768x128xbf16, #tpu.memory_space<vmem>>, vector<256x128xbf16>
    %cst_65 = arith.constant dense<0.000000e+00> : vector<32x128xf32>
    %214 = tpu.matmul %212, %213, %cst_65 {dimension_numbers = #tpu.dot_dimension_numbers<[1], [0], [0], [1], [0, 0, 1, 1], [], []>} : vector<32x256xbf16>, vector<256x128xbf16>, vector<32x128xf32> -> vector<32x128xf32>
    %215 = arith.addf %211, %214 : vector<32x128xf32>
    %c31_i32_66 = arith.constant 31 : i32
    %216 = tpu.dynamic_rotate %201 by %c31_i32_66 dim 0 : vector<32x256xf32>, i32 -> vector<32x256xf32>
    %c15_i32_67 = arith.constant 15 : i32
    %217 = vector.broadcast %c15_i32_67 : i32 to vector<32x1xi32>
    %218 = arith.cmpi slt, %16, %217 : vector<32x1xi32>
    %cst_68 = arith.constant 0.000000e+00 : f32
    %219 = vector.shape_cast %218 : vector<32x1xi1> to vector<32x1xi1>
    %220 = vector.broadcast %219 : vector<32x1xi1> to vector<32x256xi1>
    %221 = vector.broadcast %cst_68 : f32 to vector<32x256xf32>
    %222 = arith.select %220, %216, %221 : vector<32x256xi1>, vector<32x256xf32>
    %223 = arith.truncf %222 : vector<32x256xf32> to vector<32x256xbf16>
    %c512_69 = arith.constant 512 : index
    %c0_70 = arith.constant 0 : index
    %224 = vector.load %arg8[%c512_69, %c0_70] : memref<768x128xbf16, #tpu.memory_space<vmem>>, vector<256x128xbf16>
    %cst_71 = arith.constant dense<0.000000e+00> : vector<32x128xf32>
    %225 = tpu.matmul %223, %224, %cst_71 {dimension_numbers = #tpu.dot_dimension_numbers<[1], [0], [0], [1], [0, 0, 1, 1], [], []>} : vector<32x256xbf16>, vector<256x128xbf16>, vector<32x128xf32> -> vector<32x128xf32>
    %226 = arith.addf %215, %225 : vector<32x128xf32>
    %c0_72 = arith.constant 0 : index
    %c0_73 = arith.constant 0 : index
    %227 = vector.load %arg9[%c0_72, %c0_73] : memref<1x128xf32, #tpu.memory_space<vmem>>, vector<1x128xf32>
    %c0_74 = arith.constant 0 : index
    %c0_75 = arith.constant 0 : index
    %228 = vector.load %arg10[%c0_74, %c0_75] : memref<1x128xf32, #tpu.memory_space<vmem>>, vector<1x128xf32>
    %cst_76 = arith.constant dense<0.000000e+00> : vector<128xf32>
    %229 = vector.multi_reduction <add>, %226, %cst_76 [0] : vector<32x128xf32> to vector<128xf32>
    %230 = vector.shape_cast %229 : vector<128xf32> to vector<1x128xf32>
    %231 = arith.mulf %226, %226 : vector<32x128xf32>
    %cst_77 = arith.constant dense<0.000000e+00> : vector<128xf32>
    %232 = vector.multi_reduction <add>, %231, %cst_77 [0] : vector<32x128xf32> to vector<128xf32>
    %233 = vector.shape_cast %232 : vector<128xf32> to vector<1x128xf32>
    %cst_78 = arith.constant 3.125000e-02 : f32
    %234 = vector.broadcast %cst_78 : f32 to vector<1x128xf32>
    %235 = arith.mulf %230, %234 : vector<1x128xf32>
    %cst_79 = arith.constant 3.125000e-02 : f32
    %236 = vector.broadcast %cst_79 : f32 to vector<1x128xf32>
    %237 = arith.mulf %233, %236 : vector<1x128xf32>
    %238 = arith.mulf %235, %235 : vector<1x128xf32>
    %239 = arith.subf %237, %238 : vector<1x128xf32>
    %cst_80 = arith.constant 9.99999974E-6 : f32
    %240 = vector.broadcast %cst_80 : f32 to vector<1x128xf32>
    %241 = arith.addf %239, %240 : vector<1x128xf32>
    %242 = math.rsqrt %241 : vector<1x128xf32>
    %243 = arith.mulf %227, %242 : vector<1x128xf32>
    %244 = arith.mulf %235, %243 : vector<1x128xf32>
    %245 = arith.subf %228, %244 : vector<1x128xf32>
    %246 = vector.broadcast %243 : vector<1x128xf32> to vector<32x128xf32>
    %247 = arith.mulf %226, %246 : vector<32x128xf32>
    %248 = vector.broadcast %245 : vector<1x128xf32> to vector<32x128xf32>
    %249 = arith.addf %247, %248 : vector<32x128xf32>
    %cst_81 = arith.constant 0.000000e+00 : f32
    %250 = vector.broadcast %cst_81 : f32 to vector<32x128xf32>
    %251 = arith.maximumf %249, %250 : vector<32x128xf32>
    %252 = vector.shape_cast %251 : vector<32x128xf32> to vector<2x16x128xf32>
    %cst_82 = arith.constant dense<0.000000e+00> : vector<2x128xf32>
    %253 = vector.multi_reduction <add>, %252, %cst_82 [1] : vector<2x16x128xf32> to vector<2x128xf32>
    %cst_83 = arith.constant 6.250000e-02 : f32
    %254 = vector.broadcast %cst_83 : f32 to vector<2x128xf32>
    %255 = arith.mulf %253, %254 : vector<2x128xf32>
    %c0_84 = arith.constant 0 : index
    %c0_85 = arith.constant 0 : index
    %256 = vector.load %arg11[%c0_84, %c0_85] : memref<128x4xf32, #tpu.memory_space<vmem>>, vector<128x4xf32>
    %cst_86 = arith.constant dense<0.000000e+00> : vector<2x4xf32>
    %257 = tpu.matmul %255, %256, %cst_86 {dimension_numbers = #tpu.dot_dimension_numbers<[1], [0], [0], [1], [0, 0, 1, 1], [], []>} : vector<2x128xf32>, vector<128x4xf32>, vector<2x4xf32> -> vector<2x4xf32>
    %c0_87 = arith.constant 0 : index
    %c0_88 = arith.constant 0 : index
    %258 = vector.load %arg12[%c0_87, %c0_88] : memref<1x4xf32, #tpu.memory_space<vmem>>, vector<1x4xf32>
    %259 = vector.broadcast %258 : vector<1x4xf32> to vector<2x4xf32>
    %260 = arith.addf %257, %259 : vector<2x4xf32>
    %c0_89 = arith.constant 0 : index
    %c0_90 = arith.constant 0 : index
    %261 = vector.load %arg13[%c0_89, %c0_90] : memref<2x4xf32, #tpu.memory_space<vmem>>, vector<2x4xf32>
    tpu.vector_store %arg13[%c0_89, %c0_90], %260 {strides = array<i32>} : memref<2x4xf32, #tpu.memory_space<vmem>>, vector<2x4xf32>,
    return
  }
  func.func @transform_0(%arg0: i32) -> (i32, i32) {
    %c0_i32 = arith.constant 0 : i32
    %c0_i32_0 = arith.constant 0 : i32
    %c0_i32_1 = arith.constant 0 : i32
    return %c0_i32, %c0_i32_0 : i32, i32
  }
  func.func @transform_1(%arg0: i32) -> (i32, i32) {
    %c0_i32 = arith.constant 0 : i32
    %c0_i32_0 = arith.constant 0 : i32
    %c0_i32_1 = arith.constant 0 : i32
    return %c0_i32, %c0_i32_0 : i32, i32
  }
  func.func @transform_2(%arg0: i32) -> (i32, i32) {
    %c0_i32 = arith.constant 0 : i32
    %c0_i32_0 = arith.constant 0 : i32
    %c0_i32_1 = arith.constant 0 : i32
    return %c0_i32, %c0_i32_0 : i32, i32
  }
  func.func @transform_3(%arg0: i32) -> (i32, i32) {
    %c0_i32 = arith.constant 0 : i32
    %c0_i32_0 = arith.constant 0 : i32
    %c0_i32_1 = arith.constant 0 : i32
    return %c0_i32, %c0_i32_0 : i32, i32
  }
  func.func @transform_4(%arg0: i32) -> (i32, i32) {
    %c0_i32 = arith.constant 0 : i32
    %c0_i32_0 = arith.constant 0 : i32
    %c0_i32_1 = arith.constant 0 : i32
    return %c0_i32, %c0_i32_0 : i32, i32
  }
  func.func @transform_5(%arg0: i32) -> (i32, i32) {
    %c0_i32 = arith.constant 0 : i32
    %c0_i32_0 = arith.constant 0 : i32
    %c0_i32_1 = arith.constant 0 : i32
    return %c0_i32, %c0_i32_0 : i32, i32
  }
  func.func @transform_6(%arg0: i32) -> (i32, i32) {
    %c0_i32 = arith.constant 0 : i32
    %c0_i32_0 = arith.constant 0 : i32
    %c0_i32_1 = arith.constant 0 : i32
    return %c0_i32, %c0_i32_0 : i32, i32
  }
  func.func @transform_7(%arg0: i32) -> (i32, i32) {
    %c0_i32 = arith.constant 0 : i32
    %c0_i32_0 = arith.constant 0 : i32
    %c0_i32_1 = arith.constant 0 : i32
    return %c0_i32, %c0_i32_0 : i32, i32
  }
  func.func @transform_8(%arg0: i32) -> (i32, i32) {
    %c0_i32 = arith.constant 0 : i32
    %c0_i32_0 = arith.constant 0 : i32
    %c0_i32_1 = arith.constant 0 : i32
    return %c0_i32, %c0_i32_0 : i32, i32
  }
  func.func @transform_9(%arg0: i32) -> (i32, i32) {
    %c0_i32 = arith.constant 0 : i32
    %c0_i32_0 = arith.constant 0 : i32
    %c0_i32_1 = arith.constant 0 : i32
    return %c0_i32, %c0_i32_0 : i32, i32
  }
  func.func @transform_10(%arg0: i32) -> (i32, i32) {
    %c0_i32 = arith.constant 0 : i32
    %c0_i32_0 = arith.constant 0 : i32
    %c0_i32_1 = arith.constant 0 : i32
    return %c0_i32, %c0_i32_0 : i32, i32
  }
  func.func @transform_11(%arg0: i32) -> (i32, i32) {
    %c0_i32 = arith.constant 0 : i32
    %c0_i32_0 = arith.constant 0 : i32
    %c0_i32_1 = arith.constant 0 : i32
    return %c0_i32, %c0_i32_0 : i32, i32
  }
  func.func @transform_12(%arg0: i32) -> (i32, i32) {
    %c0_i32 = arith.constant 0 : i32
    %c0_i32_0 = arith.constant 0 : i32
    %c0_i32_1 = arith.constant 0 : i32
    return %c0_i32, %c0_i32_0 : i32, i32
  }
}

</mosaic_0001>

<llo_original>
// kernel: tpu_custom_call.1
$region0: #{tpu_custom_call.1}
  #allocation0 [shape = 'u32[]', space=smem, size = 0x4, offset = 0x4, fixed_abs, tag = 'smem constant byte address 0x4 - core index']
  #allocation1 [shape = 'u32[72,128]{1,0:T(1,128)}', space=vmem, size = 0x9000, scoped, tag = 'internal scratch']
  %s0 = inlined_call_operand.vmem [shape: f32[32,1], index: 0, kind: input, shape index: {}]
  %s1 = inlined_call_operand.vmem [shape: f32[8,128], index: 1, kind: input, shape index: {}]
  %s2 = inlined_call_operand.vmem [shape: f32[1,128], index: 2, kind: input, shape index: {}]
  %s3 = inlined_call_operand.vmem [shape: f32[1,128], index: 3, kind: input, shape index: {}]
  %s4 = inlined_call_operand.hbm [shape: bf16[640,256], index: 4, kind: input, shape index: {}]
  %s5 = inlined_call_operand.vmem [shape: f32[1,256], index: 5, kind: input, shape index: {}]
  %s6 = inlined_call_operand.vmem [shape: f32[1,256], index: 6, kind: input, shape index: {}]
  %s7 = inlined_call_operand.hbm [shape: bf16[768,128], index: 7, kind: input, shape index: {}]
  %s8 = inlined_call_operand.vmem [shape: f32[1,128], index: 8, kind: input, shape index: {}]
  %s9 = inlined_call_operand.vmem [shape: f32[1,128], index: 9, kind: input, shape index: {}]
  %s10 = inlined_call_operand.vmem [shape: f32[128,4], index: 10, kind: input, shape index: {}]
  %s11 = inlined_call_operand.vmem [shape: f32[1,4], index: 11, kind: input, shape index: {}]
  %s12 = inlined_call_operand.hbm [shape: f32[2,4], index: 12, kind: output, shape index: {}]
  %s13 = sld [smem:[#allocation0]]
  $region66: #{tpu_custom_call.1} parent=0
    _
  %s15 = ssub.s32 1, %s13
  %s16 = scalar_select 0, %s15, %s13
  $region1: #{tpu_custom_call.1} parent=0
    #allocation2 [shape = 'u8[327680]{0}', space=vmem, size = 0x50000, scoped, tag = 'input window, operand 4, single buffered']
    #allocation3 [shape = 's32[1]{0}', space=sflag, size = 0x4, scoped, tag = 'scoped memory for tpu_custom_call.1']
    #allocation4 [shape = 's32[1]{0}', space=sflag, size = 0x4, scoped, tag = 'scoped memory for tpu_custom_call.1']
    #allocation5 [shape = 'u8[196608]{0}', space=vmem, size = 0x30000, scoped, tag = 'input window, operand 7, single buffered']
    #allocation6 [shape = 's32[1]{0}', space=sflag, size = 0x4, scoped, tag = 'scoped memory for tpu_custom_call.1']
    #allocation7 [shape = 'u8[1024]{0}', space=vmem, size = 0x400, scoped, tag = 'output window, operand 0, single buffered']
    %17 = vsyncpa [#allocation3], 0
    %18 = vsyncpa [#allocation6], 0
    %19 = vsyncpa [#allocation4], 0
    // Predicated region
    $region2: #{tpu_custom_call.1} parent=1 // pred_check
      _
    $region3: #{tpu_custom_call.1} parent=1 // pred_check_branch
      %21 = sbr.rel (0) target = $region5
    $region4: #{tpu_custom_call.1} parent=1 // pred_region
      _
    $region5: #{tpu_custom_call.1} parent=1 // pred_fallthru
      _
    // Predicated region
    $region6: #{tpu_custom_call.1} parent=1 // pred_check
      _
    $region7: #{tpu_custom_call.1} parent=1 // pred_check_branch
      %23 = sbr.rel (0) target = $region9
    $region8: #{tpu_custom_call.1} parent=1 // pred_region
      _
    $region9: #{tpu_custom_call.1} parent=1 // pred_fallthru
      _
    // Predicated region
    $region10: #{tpu_custom_call.1} parent=1 // pred_check
      _
    $region11: #{tpu_custom_call.1} parent=1 // pred_check_branch
      %25 = sbr.rel (0) target = $region13
    $region12: #{tpu_custom_call.1} parent=1 // pred_region
      _
    $region13: #{tpu_custom_call.1} parent=1 // pred_fallthru
      _
    // Predicated region
    $region14: #{tpu_custom_call.1} parent=1 // pred_check
      _
    $region15: #{tpu_custom_call.1} parent=1 // pred_check_branch
      %27 = sbr.rel (0) target = $region17
    $region16: #{tpu_custom_call.1} parent=1 // pred_region
      _
    $region17: #{tpu_custom_call.1} parent=1 // pred_fallthru
      _
    // Predicated region
    $region18: #{tpu_custom_call.1} parent=1 // pred_check
      _
    $region19: #{tpu_custom_call.1} parent=1 // pred_check_branch
      %29 = sbr.rel (0) target = $region21
    $region20: #{tpu_custom_call.1} parent=1 // pred_region
      %31 = vsyncadd [#allocation3], 0
      %s32 = sshll.u32 %s4, 4
      %s33 = int_to_ptr.hbm [resolvable:$true] %s32
      %s34 = sshll.u32 [#allocation2], 4
      %s35 = int_to_ptr.vmem [resolvable:$true] %s34
      %40 = dma.hbm_to_vmem [thread:$0]  %s33, 10240, %s35, [#allocation3], 128, 128, 8
    $region21: #{tpu_custom_call.1} parent=1 // pred_fallthru
      _
    // Predicated region
    $region22: #{tpu_custom_call.1} parent=1 // pred_check
      _
    $region23: #{tpu_custom_call.1} parent=1 // pred_check_branch
      %42 = sbr.rel (0) target = $region25
    $region24: #{tpu_custom_call.1} parent=1 // pred_region
      _
    $region25: #{tpu_custom_call.1} parent=1 // pred_fallthru
      _
    // Predicated region
    $region26: #{tpu_custom_call.1} parent=1 // pred_check
      _
    $region27: #{tpu_custom_call.1} parent=1 // pred_check_branch
      %44 = sbr.rel (0) target = $region29
    $region28: #{tpu_custom_call.1} parent=1 // pred_region
      _
    $region29: #{tpu_custom_call.1} parent=1 // pred_fallthru
      _
    // Predicated region
    $region30: #{tpu_custom_call.1} parent=1 // pred_check
      _
    $region31: #{tpu_custom_call.1} parent=1 // pred_check_branch
      %46 = sbr.rel (0) target = $region33
    $region32: #{tpu_custom_call.1} parent=1 // pred_region
      %48 = vsyncadd [#allocation6], 0
      %s49 = sshll.u32 %s7, 4
      %s50 = int_to_ptr.hbm [resolvable:$true] %s49
      %s51 = sshll.u32 [#allocation5], 4
      %s52 = int_to_ptr.vmem [resolvable:$true] %s51
      %57 = dma.hbm_to_vmem [thread:$0]  %s50, 6144, %s52, [#allocation6], 64, 64, 4
    $region33: #{tpu_custom_call.1} parent=1 // pred_fallthru
      _
    // Predicated region
    $region34: #{tpu_custom_call.1} parent=1 // pred_check
      _
    $region35: #{tpu_custom_call.1} parent=1 // pred_check_branch
      %59 = sbr.rel (0) target = $region37
    $region36: #{tpu_custom_call.1} parent=1 // pred_region
      _
    $region37: #{tpu_custom_call.1} parent=1 // pred_fallthru
      _
    // Predicated region
    $region38: #{tpu_custom_call.1} parent=1 // pred_check
      _
    $region39: #{tpu_custom_call.1} parent=1 // pred_check_branch
      %61 = sbr.rel (0) target = $region41
    $region40: #{tpu_custom_call.1} parent=1 // pred_region
      _
    $region41: #{tpu_custom_call.1} parent=1 // pred_fallthru
      _
    // Predicated region
    $region42: #{tpu_custom_call.1} parent=1 // pred_check
      _
    $region43: #{tpu_custom_call.1} parent=1 // pred_check_branch
      %63 = sbr.rel (0) target = $region45
    $region44: #{tpu_custom_call.1} parent=1 // pred_region
      _
    $region45: #{tpu_custom_call.1} parent=1 // pred_fallthru
      _
    // Predicated region
    $region46: #{tpu_custom_call.1} parent=1 // pred_check
      _
    $region47: #{tpu_custom_call.1} parent=1 // pred_check_branch
      %65 = sbr.rel (0) target = $region49
    $region48: #{tpu_custom_call.1} parent=1 // pred_region
      _
    $region49: #{tpu_custom_call.1} parent=1 // pred_fallthru
      _
    // Predicated region
    $region50: #{tpu_custom_call.1} parent=1 // pred_check
      _
    $region51: #{tpu_custom_call.1} parent=1 // pred_check_branch
      %67 = sbr.rel (0) target = $region53
    $region52: #{tpu_custom_call.1} parent=1 // pred_region
      %69 = dma.done [#allocation3], 10240
    $region53: #{tpu_custom_call.1} parent=1 // pred_fallthru
      _
    // Predicated region
    $region54: #{tpu_custom_call.1} parent=1 // pred_check
      _
    $region55: #{tpu_custom_call.1} parent=1 // pred_check_branch
      %71 = sbr.rel (0) target = $region57
    $region56: #{tpu_custom_call.1} parent=1 // pred_region
      %73 = dma.done [#allocation6], 6144
    $region57: #{tpu_custom_call.1} parent=1 // pred_fallthru
      _
    %v74 = vlaneseq
    %v75 = vshrl.u32 %v74, 7
    %v76 = vadd.s32 %v75, 8
    %v77 = vadd.s32 %v75, 16
    %v78 = vadd.s32 %v75, 24
    %vm79 = vcmp.lt.s32.totalorder %v75, 0
    %v80 = vsub.s32 0, %v75
    %v81 = vsel %vm79, %v80, %v75
    %v82 = vshrl.u32 %v81, 4
    %v83 = vand.u32 %v81, 15
    %v84 = vsub.s32 0, %v83
    %v85 = vsel %vm79, %v84, %v83
    %vm86 = vcmp.lt.s32.totalorder %v76, 0
    %v87 = vsub.s32 0, %v76
    %v88 = vsel %vm86, %v87, %v76
    %v89 = vshrl.u32 %v88, 4
    %v90 = vand.u32 %v88, 15
    %v91 = vsub.s32 0, %v90
    %v92 = vsel %vm86, %v91, %v90
    %vm93 = vcmp.lt.s32.totalorder %v77, 0
    %v94 = vsub.s32 0, %v77
    %v95 = vsel %vm93, %v94, %v77
    %v96 = vshrl.u32 %v95, 4
    %v97 = vand.u32 %v95, 15
    %v98 = vsub.s32 0, %v97
    %v99 = vsel %vm93, %v98, %v97
    %vm100 = vcmp.lt.s32.totalorder %v78, 0
    %v101 = vsub.s32 0, %v78
    %v102 = vsel %vm100, %v101, %v78
    %v103 = vshrl.u32 %v102, 4
    %v104 = vand.u32 %v102, 15
    %v105 = vsub.s32 0, %v104
    %v106 = vsel %vm100, %v105, %v104
    %vm107 = vcmp.ne.s32.totalorder %v85, 0
    %vm108 = vcmp.ne.s32.totalorder %v92, 0
    %vm109 = vcmp.ne.s32.totalorder %v99, 0
    %vm110 = vcmp.ne.s32.totalorder %v106, 0
    %vm111 = vcmp.lt.s32.totalorder %v85, 0
    %vm112 = vcmp.lt.s32.totalorder %v92, 0
    %vm113 = vcmp.lt.s32.totalorder %v99, 0
    %vm114 = vcmp.lt.s32.totalorder %v106, 0
    %vm115 = vmand %vm111, %vm107
    %vm116 = vmand %vm112, %vm108
    %vm117 = vmand %vm113, %vm109
    %vm118 = vmand %vm114, %vm110
    %v119 = vadd.s32 %v85, 16
    %v120 = vadd.s32 %v92, 16
    %v121 = vadd.s32 %v99, 16
    %v122 = vadd.s32 %v106, 16
    %v123 = vsel %vm115, %v119, %v85
    %v124 = vsel %vm116, %v120, %v92
    %v125 = vsel %vm117, %v121, %v99
    %v126 = vsel %vm118, %v122, %v106
    %v127 = vld [vmem:[%s0] sm:$0xff]
    %v128 = vld [vmem:[%s0 + $0x8] sm:$0xff]
    %v129 = vld [vmem:[%s0 + $0x10] sm:$0xff]
    %v130 = vld [vmem:[%s0 + $0x18] sm:$0xff]
    %v131 = vld [vmem:[%s1] sm:$0xff]
    %133 = vset.pattern.permute.xlu0 0
    %134 = vperm.xlu0 %133, %v127
    %v135 = vpop.permute.xlu0 %134
    %138 = vset.pattern.permute.xlu0 0
    %139 = vperm.xlu0 %138, %v128
    %v140 = vpop.permute.xlu0 %139
    %143 = vset.pattern.permute.xlu0 0
    %144 = vperm.xlu0 %143, %v129
    %v145 = vpop.permute.xlu0 %144
    %148 = vset.pattern.permute.xlu0 0
    %149 = vperm.xlu0 %148, %v130
    %v150 = vpop.permute.xlu0 %149
    %v152 = vperm.slane %v131, 0
    %v153 = vmul.f32 %v135, %v152
    %v154 = vmul.f32 %v140, %v152
    %v155 = vmul.f32 %v145, %v152
    %v156 = vmul.f32 %v150, %v152
    %v157 = vrot.slane %v153, 4
    %v158 = vrot.slane %v154, 4
    %v159 = vrot.slane %v155, 4
    %v160 = vrot.slane %v156, 4
    %vm161 = vcmp.lt.s32.totalorder %v75, 4
    %v162 = vsel %vm161, %v159, %v160
    %v163 = vsel %vm161, %v158, %v159
    %v164 = vsel %vm161, %v157, %v158
    %v165 = vsel %vm161, %v160, %v157
    %vm166 = vcmp.ge.s32.totalorder %v123, 4
    %vm167 = vcmp.ge.s32.totalorder %v124, 4
    %vm168 = vcmp.ge.s32.totalorder %v125, 4
    %vm169 = vcmp.ge.s32.totalorder %v126, 4
    %v170 = vsel %vm166, 1, 0
    %v171 = vsel %vm167, 1, 0
    %v172 = vsel %vm168, 1, 0
    %v173 = vsel %vm169, 1, 0
    %vm174 = vcmp.eq.s32.totalorder %v170, 1
    %vm175 = vcmp.eq.s32.totalorder %v171, 1
    %vm176 = vcmp.eq.s32.totalorder %v172, 1
    %vm177 = vcmp.eq.s32.totalorder %v173, 1
    %v178 = vsel %vm174, %v165, 0.0
    %v179 = vsel %vm175, %v164, 0.0
    %v180 = vsel %vm176, %v163, 0.0
    %v181 = vsel %vm177, %v162, 0.0
    %v182 = vadd.f32 %v178, 0.0
    %v183 = vadd.f32 %v179, 0.0
    %v184 = vadd.f32 %v180, 0.0
    %v185 = vadd.f32 %v181, 0.0
    %v186 = vperm.slane %v131, 1
    %v187 = vmul.f32 %v135, %v186
    %v188 = vmul.f32 %v140, %v186
    %v189 = vmul.f32 %v145, %v186
    %v190 = vmul.f32 %v150, %v186
    %v191 = vrot.slane %v187, 5
    %v192 = vrot.slane %v188, 5
    %v193 = vrot.slane %v189, 5
    %v194 = vrot.slane %v190, 5
    %vm195 = vcmp.lt.s32.totalorder %v75, 3
    %v196 = vsel %vm195, %v193, %v194
    %v197 = vsel %vm195, %v192, %v193
    %v198 = vsel %vm195, %v191, %v192
    %v199 = vsel %vm195, %v194, %v191
    %vm200 = vcmp.ge.s32.totalorder %v123, 3
    %vm201 = vcmp.ge.s32.totalorder %v124, 3
    %vm202 = vcmp.ge.s32.totalorder %v125, 3
    %vm203 = vcmp.ge.s32.totalorder %v126, 3
    %v204 = vsel %vm200, 1, 0
    %v205 = vsel %vm201, 1, 0
    %v206 = vsel %vm202, 1, 0
    %v207 = vsel %vm203, 1, 0
    %vm208 = vcmp.eq.s32.totalorder %v204, 1
    %vm209 = vcmp.eq.s32.totalorder %v205, 1
    %vm210 = vcmp.eq.s32.totalorder %v206, 1
    %vm211 = vcmp.eq.s32.totalorder %v207, 1
    %v212 = vsel %vm208, %v199, 0.0
    %v213 = vsel %vm209, %v198, 0.0
    %v214 = vsel %vm210, %v197, 0.0
    %v215 = vsel %vm211, %v196, 0.0
    %v216 = vadd.f32 %v182, %v212
    %v217 = vadd.f32 %v183, %v213
    %v218 = vadd.f32 %v184, %v214
    %v219 = vadd.f32 %v185, %v215
    %v220 = vperm.slane %v131, 2
    %v221 = vmul.f32 %v135, %v220
    %v222 = vmul.f32 %v140, %v220
    %v223 = vmul.f32 %v145, %v220
    %v224 = vmul.f32 %v150, %v220
    %v225 = vrot.slane %v221, 6
    %v226 = vrot.slane %v222, 6
    %v227 = vrot.slane %v223, 6
    %v228 = vrot.slane %v224, 6
    %vm229 = vcmp.lt.s32.totalorder %v75, 2
    %v230 = vsel %vm229, %v227, %v228
    %v231 = vsel %vm229, %v226, %v227
    %v232 = vsel %vm229, %v225, %v226
    %v233 = vsel %vm229, %v228, %v225
    %vm234 = vcmp.ge.s32.totalorder %v123, 2
    %vm235 = vcmp.ge.s32.totalorder %v124, 2
    %vm236 = vcmp.ge.s32.totalorder %v125, 2
    %vm237 = vcmp.ge.s32.totalorder %v126, 2
    %v238 = vsel %vm234, 1, 0
    %v239 = vsel %vm235, 1, 0
    %v240 = vsel %vm236, 1, 0
    %v241 = vsel %vm237, 1, 0
    %vm242 = vcmp.eq.s32.totalorder %v238, 1
    %vm243 = vcmp.eq.s32.totalorder %v239, 1
    %vm244 = vcmp.eq.s32.totalorder %v240, 1
    %vm245 = vcmp.eq.s32.totalorder %v241, 1
    %v246 = vsel %vm242, %v233, 0.0
    %v247 = vsel %vm243, %v232, 0.0
    %v248 = vsel %vm244, %v231, 0.0
    %v249 = vsel %vm245, %v230, 0.0
    %v250 = vadd.f32 %v216, %v246
    %v251 = vadd.f32 %v217, %v247
    %v252 = vadd.f32 %v218, %v248
    %v253 = vadd.f32 %v219, %v249
    %v254 = vperm.slane %v131, 3
    %v255 = vmul.f32 %v135, %v254
    %v256 = vmul.f32 %v140, %v254
    %v257 = vmul.f32 %v145, %v254
    %v258 = vmul.f32 %v150, %v254
    %v259 = vrot.slane %v255, 7
    %v260 = vrot.slane %v256, 7
    %v261 = vrot.slane %v257, 7
    %v262 = vrot.slane %v258, 7
    %vm263 = vcmp.lt.s32.totalorder %v75, 1
    %v264 = vsel %vm263, %v261, %v262
    %v265 = vsel %vm263, %v260, %v261
    %v266 = vsel %vm263, %v259, %v260
    %v267 = vsel %vm263, %v262, %v259
    %vm268 = vcmp.ge.s32.totalorder %v123, 1
    %vm269 = vcmp.ge.s32.totalorder %v124, 1
    %vm270 = vcmp.ge.s32.totalorder %v125, 1
    %vm271 = vcmp.ge.s32.totalorder %v126, 1
    %v272 = vsel %vm268, 1, 0
    %v273 = vsel %vm269, 1, 0
    %v274 = vsel %vm270, 1, 0
    %v275 = vsel %vm271, 1, 0
    %vm276 = vcmp.eq.s32.totalorder %v272, 1
    %vm277 = vcmp.eq.s32.totalorder %v273, 1
    %vm278 = vcmp.eq.s32.totalorder %v274, 1
    %vm279 = vcmp.eq.s32.totalorder %v275, 1
    %v280 = vsel %vm276, %v267, 0.0
    %v281 = vsel %vm277, %v266, 0.0
    %v282 = vsel %vm278, %v265, 0.0
    %v283 = vsel %vm279, %v264, 0.0
    %v284 = vadd.f32 %v250, %v280
    %v285 = vadd.f32 %v251, %v281
    %v286 = vadd.f32 %v252, %v282
    %v287 = vadd.f32 %v253, %v283
    %v288 = vperm.slane %v131, 4
    %v289 = vmul.f32 %v135, %v288
    %v290 = vmul.f32 %v140, %v288
    %v291 = vmul.f32 %v145, %v288
    %v292 = vmul.f32 %v150, %v288
    %v293 = vadd.f32 %v284, %v289
    %v294 = vadd.f32 %v285, %v290
    %v295 = vadd.f32 %v286, %v291
    %v296 = vadd.f32 %v287, %v292
    %v297 = vperm.slane %v131, 5
    %v298 = vmul.f32 %v135, %v297
    %v299 = vmul.f32 %v140, %v297
    %v300 = vmul.f32 %v145, %v297
    %v301 = vmul.f32 %v150, %v297
    %v302 = vrot.slane %v298, 1
    %v303 = vrot.slane %v299, 1
    %v304 = vrot.slane %v300, 1
    %v305 = vrot.slane %v301, 1
    %vm306 = vcmp.lt.s32.totalorder %v75, 7
    %v307 = vsel %vm306, %v304, %v305
    %v308 = vsel %vm306, %v303, %v304
    %v309 = vsel %vm306, %v302, %v303
    %v310 = vsel %vm306, %v305, %v302
    %vm311 = vcmp.lt.s32.totalorder %v123, 15
    %vm312 = vcmp.lt.s32.totalorder %v124, 15
    %vm313 = vcmp.lt.s32.totalorder %v125, 15
    %vm314 = vcmp.lt.s32.totalorder %v126, 15
    %v315 = vsel %vm311, 1, 0
    %v316 = vsel %vm312, 1, 0
    %v317 = vsel %vm313, 1, 0
    %v318 = vsel %vm314, 1, 0
    %vm319 = vcmp.eq.s32.totalorder %v315, 1
    %vm320 = vcmp.eq.s32.totalorder %v316, 1
    %vm321 = vcmp.eq.s32.totalorder %v317, 1
    %vm322 = vcmp.eq.s32.totalorder %v318, 1
    %v323 = vsel %vm319, %v309, 0.0
    %v324 = vsel %vm320, %v308, 0.0
    %v325 = vsel %vm321, %v307, 0.0
    %v326 = vsel %vm322, %v310, 0.0
    %v327 = vadd.f32 %v293, %v323
    %v328 = vadd.f32 %v294, %v324
    %v329 = vadd.f32 %v295, %v325
    %v330 = vadd.f32 %v296, %v326
    %v331 = vperm.slane %v131, 6
    %v332 = vmul.f32 %v135, %v331
    %v333 = vmul.f32 %v140, %v331
    %v334 = vmul.f32 %v145, %v331
    %v335 = vmul.f32 %v150, %v331
    %v336 = vrot.slane %v332, 2
    %v337 = vrot.slane %v333, 2
    %v338 = vrot.slane %v334, 2
    %v339 = vrot.slane %v335, 2
    %vm340 = vcmp.lt.s32.totalorder %v75, 6
    %v341 = vsel %vm340, %v338, %v339
    %v342 = vsel %vm340, %v337, %v338
    %v343 = vsel %vm340, %v336, %v337
    %v344 = vsel %vm340, %v339, %v336
    %vm345 = vcmp.lt.s32.totalorder %v123, 14
    %vm346 = vcmp.lt.s32.totalorder %v124, 14
    %vm347 = vcmp.lt.s32.totalorder %v125, 14
    %vm348 = vcmp.lt.s32.totalorder %v126, 14
    %v349 = vsel %vm345, 1, 0
    %v350 = vsel %vm346, 1, 0
    %v351 = vsel %vm347, 1, 0
    %v352 = vsel %vm348, 1, 0
    %vm353 = vcmp.eq.s32.totalorder %v349, 1
    %vm354 = vcmp.eq.s32.totalorder %v350, 1
    %vm355 = vcmp.eq.s32.totalorder %v351, 1
    %vm356 = vcmp.eq.s32.totalorder %v352, 1
    %v357 = vsel %vm353, %v343, 0.0
    %v358 = vsel %vm354, %v342, 0.0
    %v359 = vsel %vm355, %v341, 0.0
    %v360 = vsel %vm356, %v344, 0.0
    %v361 = vadd.f32 %v327, %v357
    %v362 = vadd.f32 %v328, %v358
    %v363 = vadd.f32 %v329, %v359
    %v364 = vadd.f32 %v330, %v360
    %v365 = vperm.slane %v131, 7
    %v366 = vmul.f32 %v135, %v365
    %v367 = vmul.f32 %v140, %v365
    %v368 = vmul.f32 %v145, %v365
    %v369 = vmul.f32 %v150, %v365
    %v370 = vrot.slane %v366, 3
    %v371 = vrot.slane %v367, 3
    %v372 = vrot.slane %v368, 3
    %v373 = vrot.slane %v369, 3
    %vm374 = vcmp.lt.s32.totalorder %v75, 5
    %v375 = vsel %vm374, %v372, %v373
    %v376 = vsel %vm374, %v371, %v372
    %v377 = vsel %vm374, %v370, %v371
    %v378 = vsel %vm374, %v373, %v370
    %vm379 = vcmp.lt.s32.totalorder %v123, 13
    %vm380 = vcmp.lt.s32.totalorder %v124, 13
    %vm381 = vcmp.lt.s32.totalorder %v125, 13
    %vm382 = vcmp.lt.s32.totalorder %v126, 13
    %v383 = vsel %vm379, 1, 0
    %v384 = vsel %vm380, 1, 0
    %v385 = vsel %vm381, 1, 0
    %v386 = vsel %vm382, 1, 0
    %vm387 = vcmp.eq.s32.totalorder %v383, 1
    %vm388 = vcmp.eq.s32.totalorder %v384, 1
    %vm389 = vcmp.eq.s32.totalorder %v385, 1
    %vm390 = vcmp.eq.s32.totalorder %v386, 1
    %v391 = vsel %vm387, %v377, 0.0
    %v392 = vsel %vm388, %v376, 0.0
    %v393 = vsel %vm389, %v375, 0.0
    %v394 = vsel %vm390, %v378, 0.0
    %v395 = vadd.f32 %v361, %v391
    %v396 = vadd.f32 %v362, %v392
    %v397 = vadd.f32 %v363, %v393
    %v398 = vadd.f32 %v364, %v394
    %v399 = vld [vmem:[%s2] sm:$0x1]
    %v400 = vld [vmem:[%s3] sm:$0x1]
    %v401 = vadd.f32 %v395, %v396
    %v402 = vadd.f32 %v401, %v397
    %v403 = vadd.f32 %v402, %v398
    %v404 = vrot.slane %v403, 4
    %v405 = vadd.f32 %v403, %v404
    %v406 = vrot.slane %v405, 2
    %v407 = vadd.f32 %v405, %v406
    %v408 = vrot.slane %v407, 1
    %v409 = vadd.f32 %v407, %v408
    %v410 = vmul.f32 %v395, %v395
    %v411 = vmul.f32 %v396, %v396
    %v412 = vmul.f32 %v397, %v397
    %v413 = vmul.f32 %v398, %v398
    %v414 = vadd.f32 %v410, %v411
    %v415 = vadd.f32 %v414, %v412
    %v416 = vadd.f32 %v415, %v413
    %v417 = vrot.slane %v416, 4
    %v418 = vadd.f32 %v416, %v417
    %v419 = vrot.slane %v418, 2
    %v420 = vadd.f32 %v418, %v419
    %v421 = vrot.slane %v420, 1
    %v422 = vadd.f32 %v420, %v421
    %v423 = vmul.f32 %v409, 0.03125
    %v424 = vmul.f32 %v422, 0.03125
    %v425 = vmul.f32 %v423, %v423
    %v426 = vsub.f32 %v424, %v425
    %v427 = vadd.f32 %v426, 1e-05
    %v428 = vrsqrt.pop %v427
    %v429 = vmul.f32 %v428, %v427
    %v430 = vmul.f32 %v429, %v428
    %v431 = vmul.f32 0.5, %v430
    %v432 = vsub.f32 1.5, %v431
    %v433 = vmul.f32 %v428, %v432
    %vm434 = vweird.f32 %v427
    %vm435 = vweird.f32 %v428
    %vm436 = vmor %vm434, %vm435
    %v437 = vsel %vm436, %v428, %v433
    %v438 = vmul.f32 %v399, %v437
    %v439 = vmul.f32 %v423, %v438
    %v440 = vsub.f32 %v400, %v439
    %v442 = vperm.slane %v438, 0
    %v444 = vmul.f32 %v395, %v442
    %v445 = vmul.f32 %v396, %v442
    %v446 = vmul.f32 %v397, %v442
    %v447 = vmul.f32 %v398, %v442
    %v449 = vperm.slane %v440, 0
    %v451 = vadd.f32 %v444, %v449
    %v452 = vadd.f32 %v445, %v449
    %v453 = vadd.f32 %v446, %v449
    %v454 = vadd.f32 %v447, %v449
    %v455 = vmax.f32 %v451, 0.0
    %v456 = vmax.f32 %v452, 0.0
    %v457 = vmax.f32 %v453, 0.0
    %v458 = vmax.f32 %v454, 0.0
    %v459 = vrot.slane %v455, 6
    %v460 = vrot.slane %v456, 6
    %v461 = vrot.slane %v457, 6
    %v462 = vrot.slane %v458, 6
    %v463 = vsel %vm229, %v461, %v462
    %v464 = vsel %vm229, %v460, %v461
    %v465 = vsel %vm229, %v459, %v460
    %v466 = vsel %vm229, %v462, %v459
    %v467 = vsel %vm242, %v466, 0.0
    %v468 = vsel %vm243, %v465, 0.0
    %v469 = vsel %vm244, %v464, 0.0
    %v470 = vsel %vm245, %v463, 0.0
    %v471 = vpack.c.bf16 %v467, %v467
    %v472 = vpack.c.bf16 %v468, %v468
    %v473 = vpack.c.bf16 %v469, %v469
    %v474 = vpack.c.bf16 %v470, %v470
    %v475 = vrot.slane %v455, 7
    %v476 = vrot.slane %v456, 7
    %v477 = vrot.slane %v457, 7
    %v478 = vrot.slane %v458, 7
    %v479 = vsel %vm263, %v477, %v478
    %v480 = vsel %vm263, %v476, %v477
    %v481 = vsel %vm263, %v475, %v476
    %v482 = vsel %vm263, %v478, %v475
    %v483 = vsel %vm276, %v482, 0.0
    %v484 = vsel %vm277, %v481, 0.0
    %v485 = vsel %vm278, %v480, 0.0
    %v486 = vsel %vm279, %v479, 0.0
    %v487 = vpack.c.bf16 %v483, %v483
    %v488 = vpack.c.bf16 %v484, %v484
    %v489 = vpack.c.bf16 %v485, %v485
    %v490 = vpack.c.bf16 %v486, %v486
    %v495 = vunpack.c.l.b16 %v471
    %v496 = vunpack.c.l.b16 %v472
    %v497 = vunpack.c.l.b16 %v473
    %v498 = vunpack.c.l.b16 %v474
    %v499 = vpack.c.b16 %v496, %v495
    %v500 = vpack.c.b16 %v498, %v497
    %v507 = vunpack.c.l.b16 %v487
    %v508 = vunpack.c.l.b16 %v488
    %v509 = vunpack.c.l.b16 %v489
    %v510 = vunpack.c.l.b16 %v490
    %v511 = vpack.c.b16 %v508, %v507
    %v512 = vpack.c.b16 %v510, %v509
    %v515 = vld [vmem:[#allocation2] sm:$0xff]
    %v516 = vld [vmem:[#allocation2 + $0x8] sm:$0xff]
    %v517 = vld [vmem:[#allocation2 + $0x10] sm:$0xff]
    %v518 = vld [vmem:[#allocation2 + $0x18] sm:$0xff]
    %v519 = vld [vmem:[#allocation2 + $0x20] sm:$0xff]
    %v520 = vld [vmem:[#allocation2 + $0x28] sm:$0xff]
    %v521 = vld [vmem:[#allocation2 + $0x30] sm:$0xff]
    %v522 = vld [vmem:[#allocation2 + $0x38] sm:$0xff]
    %v523 = vld [vmem:[#allocation2 + $0x40] sm:$0xff]
    %v524 = vld [vmem:[#allocation2 + $0x48] sm:$0xff]
    %v525 = vld [vmem:[#allocation2 + $0x50] sm:$0xff]
    %v526 = vld [vmem:[#allocation2 + $0x58] sm:$0xff]
    %v527 = vld [vmem:[#allocation2 + $0x60] sm:$0xff]
    %v528 = vld [vmem:[#allocation2 + $0x68] sm:$0xff]
    %v529 = vld [vmem:[#allocation2 + $0x70] sm:$0xff]
    %v530 = vld [vmem:[#allocation2 + $0x78] sm:$0xff]
    %v531 = vld [vmem:[#allocation2 + $0x80] sm:$0xff]
    %v532 = vld [vmem:[#allocation2 + $0x88] sm:$0xff]
    %v533 = vld [vmem:[#allocation2 + $0x90] sm:$0xff]
    %v534 = vld [vmem:[#allocation2 + $0x98] sm:$0xff]
    %v535 = vld [vmem:[#allocation2 + $0xa0] sm:$0xff]
    %v536 = vld [vmem:[#allocation2 + $0xa8] sm:$0xff]
    %v537 = vld [vmem:[#allocation2 + $0xb0] sm:$0xff]
    %v538 = vld [vmem:[#allocation2 + $0xb8] sm:$0xff]
    %v539 = vld [vmem:[#allocation2 + $0xc0] sm:$0xff]
    %v540 = vld [vmem:[#allocation2 + $0xc8] sm:$0xff]
    %v541 = vld [vmem:[#allocation2 + $0xd0] sm:$0xff]
    %v542 = vld [vmem:[#allocation2 + $0xd8] sm:$0xff]
    %v543 = vld [vmem:[#allocation2 + $0xe0] sm:$0xff]
    %v544 = vld [vmem:[#allocation2 + $0xe8] sm:$0xff]
    %v545 = vld [vmem:[#allocation2 + $0xf0] sm:$0xff]
    %v546 = vld [vmem:[#allocation2 + $0xf8] sm:$0xff]
    %v547 = vpack.c.bf16 %v455, %v455
    %v548 = vpack.c.bf16 %v456, %v456
    %v549 = vpack.c.bf16 %v457, %v457
    %v550 = vpack.c.bf16 %v458, %v458
    %v551 = vrot.slane %v455, 1
    %v552 = vrot.slane %v456, 1
    %v553 = vrot.slane %v457, 1
    %v554 = vrot.slane %v458, 1
    %v555 = vsel %vm306, %v553, %v554
    %v556 = vsel %vm306, %v552, %v553
    %v557 = vsel %vm306, %v551, %v552
    %v558 = vsel %vm306, %v554, %v551
    %v559 = vsel %vm319, %v557, 0.0
    %v560 = vsel %vm320, %v556, 0.0
    %v561 = vsel %vm321, %v555, 0.0
    %v562 = vsel %vm322, %v558, 0.0
    %v563 = vpack.c.bf16 %v559, %v559
    %v564 = vpack.c.bf16 %v560, %v560
    %v565 = vpack.c.bf16 %v561, %v561
    %v566 = vpack.c.bf16 %v562, %v562
    %v571 = vunpack.c.l.b16 %v547
    %v572 = vunpack.c.l.b16 %v548
    %v573 = vunpack.c.l.b16 %v549
    %v574 = vunpack.c.l.b16 %v550
    %v575 = vpack.c.b16 %v572, %v571
    %v576 = vpack.c.b16 %v574, %v573
    %v583 = vunpack.c.l.b16 %v563
    %v584 = vunpack.c.l.b16 %v564
    %v585 = vunpack.c.l.b16 %v565
    %v586 = vunpack.c.l.b16 %v566
    %v587 = vpack.c.b16 %v584, %v583
    %v588 = vpack.c.b16 %v586, %v585
    %v591 = vld [vmem:[#allocation2 + $0x100] sm:$0xff]
    %v592 = vld [vmem:[#allocation2 + $0x108] sm:$0xff]
    %v593 = vld [vmem:[#allocation2 + $0x110] sm:$0xff]
    %v594 = vld [vmem:[#allocation2 + $0x118] sm:$0xff]
    %v595 = vld [vmem:[#allocation2 + $0x120] sm:$0xff]
    %v596 = vld [vmem:[#allocation2 + $0x128] sm:$0xff]
    %v597 = vld [vmem:[#allocation2 + $0x130] sm:$0xff]
    %v598 = vld [vmem:[#allocation2 + $0x138] sm:$0xff]
    %v599 = vld [vmem:[#allocation2 + $0x140] sm:$0xff]
    %v600 = vld [vmem:[#allocation2 + $0x148] sm:$0xff]
    %v601 = vld [vmem:[#allocation2 + $0x150] sm:$0xff]
    %v602 = vld [vmem:[#allocation2 + $0x158] sm:$0xff]
    %v603 = vld [vmem:[#allocation2 + $0x160] sm:$0xff]
    %v604 = vld [vmem:[#allocation2 + $0x168] sm:$0xff]
    %v605 = vld [vmem:[#allocation2 + $0x170] sm:$0xff]
    %v606 = vld [vmem:[#allocation2 + $0x178] sm:$0xff]
    %v607 = vld [vmem:[#allocation2 + $0x180] sm:$0xff]
    %v608 = vld [vmem:[#allocation2 + $0x188] sm:$0xff]
    %v609 = vld [vmem:[#allocation2 + $0x190] sm:$0xff]
    %v610 = vld [vmem:[#allocation2 + $0x198] sm:$0xff]
    %v611 = vld [vmem:[#allocation2 + $0x1a0] sm:$0xff]
    %v612 = vld [vmem:[#allocation2 + $0x1a8] sm:$0xff]
    %v613 = vld [vmem:[#allocation2 + $0x1b0] sm:$0xff]
    %v614 = vld [vmem:[#allocation2 + $0x1b8] sm:$0xff]
    %v615 = vld [vmem:[#allocation2 + $0x1c0] sm:$0xff]
    %v616 = vld [vmem:[#allocation2 + $0x1c8] sm:$0xff]
    %v617 = vld [vmem:[#allocation2 + $0x1d0] sm:$0xff]
    %v618 = vld [vmem:[#allocation2 + $0x1d8] sm:$0xff]
    %v619 = vld [vmem:[#allocation2 + $0x1e0] sm:$0xff]
    %v620 = vld [vmem:[#allocation2 + $0x1e8] sm:$0xff]
    %v621 = vld [vmem:[#allocation2 + $0x1f0] sm:$0xff]
    %v622 = vld [vmem:[#allocation2 + $0x1f8] sm:$0xff]
    %v655 = vunpack.c.l.b16 %v591
    %v656 = vunpack.c.h.b16 %v591
    %v657 = vunpack.c.l.b16 %v592
    %v658 = vunpack.c.h.b16 %v592
    %v659 = vunpack.c.l.b16 %v593
    %v660 = vunpack.c.h.b16 %v593
    %v661 = vunpack.c.l.b16 %v594
    %v662 = vunpack.c.h.b16 %v594
    %v663 = vunpack.c.l.b16 %v595
    %v664 = vunpack.c.h.b16 %v595
    %v665 = vunpack.c.l.b16 %v596
    %v666 = vunpack.c.h.b16 %v596
    %v667 = vunpack.c.l.b16 %v597
    %v668 = vunpack.c.h.b16 %v597
    %v669 = vunpack.c.l.b16 %v598
    %v670 = vunpack.c.h.b16 %v598
    %v671 = vunpack.c.l.b16 %v599
    %v672 = vunpack.c.h.b16 %v599
    %v673 = vunpack.c.l.b16 %v600
    %v674 = vunpack.c.h.b16 %v600
    %v675 = vunpack.c.l.b16 %v601
    %v676 = vunpack.c.h.b16 %v601
    %v677 = vunpack.c.l.b16 %v602
    %v678 = vunpack.c.h.b16 %v602
    %v679 = vunpack.c.l.b16 %v603
    %v680 = vunpack.c.h.b16 %v603
    %v681 = vunpack.c.l.b16 %v604
    %v682 = vunpack.c.h.b16 %v604
    %v683 = vunpack.c.l.b16 %v605
    %v684 = vunpack.c.h.b16 %v605
    %v685 = vunpack.c.l.b16 %v606
    %v686 = vunpack.c.h.b16 %v606
    %v687 = vunpack.c.l.b16 %v607
    %v688 = vunpack.c.h.b16 %v607
    %v689 = vunpack.c.l.b16 %v608
    %v690 = vunpack.c.h.b16 %v608
    %v691 = vunpack.c.l.b16 %v609
    %v692 = vunpack.c.h.b16 %v609
    %v693 = vunpack.c.l.b16 %v610
    %v694 = vunpack.c.h.b16 %v610
    %v695 = vunpack.c.l.b16 %v611
    %v696 = vunpack.c.h.b16 %v611
    %v697 = vunpack.c.l.b16 %v612
    %v698 = vunpack.c.h.b16 %v612
    %v699 = vunpack.c.l.b16 %v613
    %v700 = vunpack.c.h.b16 %v613
    %v701 = vunpack.c.l.b16 %v614
    %v702 = vunpack.c.h.b16 %v614
    %v703 = vunpack.c.l.b16 %v615
    %v704 = vunpack.c.h.b16 %v615
    %v705 = vunpack.c.l.b16 %v616
    %v706 = vunpack.c.h.b16 %v616
    %v707 = vunpack.c.l.b16 %v617
    %v708 = vunpack.c.h.b16 %v617
    %v709 = vunpack.c.l.b16 %v618
    %v710 = vunpack.c.h.b16 %v618
    %v711 = vunpack.c.l.b16 %v619
    %v712 = vunpack.c.h.b16 %v619
    %v713 = vunpack.c.l.b16 %v620
    %v714 = vunpack.c.h.b16 %v620
    %v715 = vunpack.c.l.b16 %v621
    %v716 = vunpack.c.h.b16 %v621
    %v717 = vunpack.c.l.b16 %v622
    %v718 = vunpack.c.h.b16 %v622
    %v719 = vpack.c.b16 %v657, %v655
    %v720 = vpack.c.b16 %v658, %v656
    %v721 = vpack.c.b16 %v661, %v659
    %v722 = vpack.c.b16 %v662, %v660
    %v723 = vpack.c.b16 %v665, %v663
    %v724 = vpack.c.b16 %v666, %v664
    %v725 = vpack.c.b16 %v669, %v667
    %v726 = vpack.c.b16 %v670, %v668
    %v727 = vpack.c.b16 %v673, %v671
    %v728 = vpack.c.b16 %v674, %v672
    %v729 = vpack.c.b16 %v677, %v675
    %v730 = vpack.c.b16 %v678, %v676
    %v731 = vpack.c.b16 %v681, %v679
    %v732 = vpack.c.b16 %v682, %v680
    %v733 = vpack.c.b16 %v685, %v683
    %v734 = vpack.c.b16 %v686, %v684
    %v735 = vpack.c.b16 %v689, %v687
    %v736 = vpack.c.b16 %v690, %v688
    %v737 = vpack.c.b16 %v693, %v691
    %v738 = vpack.c.b16 %v694, %v692
    %v739 = vpack.c.b16 %v697, %v695
    %v740 = vpack.c.b16 %v698, %v696
    %v741 = vpack.c.b16 %v701, %v699
    %v742 = vpack.c.b16 %v702, %v700
    %v743 = vpack.c.b16 %v705, %v703
    %v744 = vpack.c.b16 %v706, %v704
    %v745 = vpack.c.b16 %v709, %v707
    %v746 = vpack.c.b16 %v710, %v708
    %v747 = vpack.c.b16 %v713, %v711
    %v748 = vpack.c.b16 %v714, %v712
    %v749 = vpack.c.b16 %v717, %v715
    %v750 = vpack.c.b16 %v718, %v716
    %783 = vmatpush.bf16.msra.mxu0 %v733
    %784 = vmatpush.bf16.msra.mxu0 %v731
    %785 = vmatpush.bf16.msra.mxu0 %v729
    %786 = vmatpush.bf16.msra.mxu0 %v727
    %787 = vmatpush.bf16.msra.mxu0 %v725
    %788 = vmatpush.bf16.msra.mxu0 %v723
    %789 = vmatpush.bf16.msra.mxu0 %v721
    %790 = vmatpush.bf16.msra.mxu0 %v719
    %791 = vmatmul.bf16.gmra.mxu0 %v575
    %v792 = vpop.f32.mrf.mxu0
    %v793 = vadd.f32 0.0, %v792
    %v794 = vpop.f32.mrf.mxu0
    %v795 = vadd.f32 0.0, %v794
    %796 = vmatmul.bf16.gmra.mxu0 %v576
    %v797 = vpop.f32.mrf.mxu0
    %v798 = vadd.f32 0.0, %v797
    %v799 = vpop.f32.mrf.mxu0
    %v800 = vadd.f32 0.0, %v799
    %801 = vdwg.mxu0
    %802 = vmatpush.bf16.msra.mxu0 %v749
    %803 = vmatpush.bf16.msra.mxu0 %v747
    %804 = vmatpush.bf16.msra.mxu0 %v745
    %805 = vmatpush.bf16.msra.mxu0 %v743
    %806 = vmatpush.bf16.msra.mxu0 %v741
    %807 = vmatpush.bf16.msra.mxu0 %v739
    %808 = vmatpush.bf16.msra.mxu0 %v737
    %809 = vmatpush.bf16.msra.mxu0 %v735
    %810 = vmatmul.bf16.gmra.mxu0 %v587
    %v811 = vpop.f32.mrf.mxu0
    %v812 = vadd.f32 %v793, %v811
    %v813 = vpop.f32.mrf.mxu0
    %v814 = vadd.f32 %v795, %v813
    %815 = vmatmul.bf16.gmra.mxu0 %v588
    %v816 = vpop.f32.mrf.mxu0
    %v817 = vadd.f32 %v798, %v816
    %v818 = vpop.f32.mrf.mxu0
    %v819 = vadd.f32 %v800, %v818
    %820 = vdwg.mxu0
    %821 = vmatpush.bf16.msra.mxu0 %v734
    %822 = vmatpush.bf16.msra.mxu0 %v732
    %823 = vmatpush.bf16.msra.mxu0 %v730
    %824 = vmatpush.bf16.msra.mxu0 %v728
    %825 = vmatpush.bf16.msra.mxu0 %v726
    %826 = vmatpush.bf16.msra.mxu0 %v724
    %827 = vmatpush.bf16.msra.mxu0 %v722
    %828 = vmatpush.bf16.msra.mxu0 %v720
    %829 = vmatmul.bf16.gmra.mxu0 %v575
    %v830 = vpop.f32.mrf.mxu0
    %v831 = vadd.f32 0.0, %v830
    %v832 = vpop.f32.mrf.mxu0
    %v833 = vadd.f32 0.0, %v832
    %834 = vmatmul.bf16.gmra.mxu0 %v576
    %v835 = vpop.f32.mrf.mxu0
    %v836 = vadd.f32 0.0, %v835
    %v837 = vpop.f32.mrf.mxu0
    %v838 = vadd.f32 0.0, %v837
    %839 = vdwg.mxu0
    %840 = vmatpush.bf16.msra.mxu0 %v750
    %841 = vmatpush.bf16.msra.mxu0 %v748
    %842 = vmatpush.bf16.msra.mxu0 %v746
    %843 = vmatpush.bf16.msra.mxu0 %v744
    %844 = vmatpush.bf16.msra.mxu0 %v742
    %845 = vmatpush.bf16.msra.mxu0 %v740
    %846 = vmatpush.bf16.msra.mxu0 %v738
    %847 = vmatpush.bf16.msra.mxu0 %v736
    %848 = vmatmul.bf16.gmra.mxu0 %v587
    %v849 = vpop.f32.mrf.mxu0
    %v850 = vadd.f32 %v831, %v849
    %v851 = vpop.f32.mrf.mxu0
    %v852 = vadd.f32 %v833, %v851
    %853 = vmatmul.bf16.gmra.mxu0 %v588
    %v854 = vpop.f32.mrf.mxu0
    %v855 = vadd.f32 %v836, %v854
    %v856 = vpop.f32.mrf.mxu0
    %v857 = vadd.f32 %v838, %v856
    %858 = vdwg.mxu0
    %v891 = vunpack.c.l.b16 %v515
    %v892 = vunpack.c.h.b16 %v515
    %v893 = vunpack.c.l.b16 %v516
    %v894 = vunpack.c.h.b16 %v516
    %v895 = vunpack.c.l.b16 %v517
    %v896 = vunpack.c.h.b16 %v517
    %v897 = vunpack.c.l.b16 %v518
    %v898 = vunpack.c.h.b16 %v518
    %v899 = vunpack.c.l.b16 %v519
    %v900 = vunpack.c.h.b16 %v519
    %v901 = vunpack.c.l.b16 %v520
    %v902 = vunpack.c.h.b16 %v520
    %v903 = vunpack.c.l.b16 %v521
    %v904 = vunpack.c.h.b16 %v521
    %v905 = vunpack.c.l.b16 %v522
    %v906 = vunpack.c.h.b16 %v522
    %v907 = vunpack.c.l.b16 %v523
    %v908 = vunpack.c.h.b16 %v523
    %v909 = vunpack.c.l.b16 %v524
    %v910 = vunpack.c.h.b16 %v524
    %v911 = vunpack.c.l.b16 %v525
    %v912 = vunpack.c.h.b16 %v525
    %v913 = vunpack.c.l.b16 %v526
    %v914 = vunpack.c.h.b16 %v526
    %v915 = vunpack.c.l.b16 %v527
    %v916 = vunpack.c.h.b16 %v527
    %v917 = vunpack.c.l.b16 %v528
    %v918 = vunpack.c.h.b16 %v528
    %v919 = vunpack.c.l.b16 %v529
    %v920 = vunpack.c.h.b16 %v529
    %v921 = vunpack.c.l.b16 %v530
    %v922 = vunpack.c.h.b16 %v530
    %v923 = vunpack.c.l.b16 %v531
    %v924 = vunpack.c.h.b16 %v531
    %v925 = vunpack.c.l.b16 %v532
    %v926 = vunpack.c.h.b16 %v532
    %v927 = vunpack.c.l.b16 %v533
    %v928 = vunpack.c.h.b16 %v533
    %v929 = vunpack.c.l.b16 %v534
    %v930 = vunpack.c.h.b16 %v534
    %v931 = vunpack.c.l.b16 %v535
    %v932 = vunpack.c.h.b16 %v535
    %v933 = vunpack.c.l.b16 %v536
    %v934 = vunpack.c.h.b16 %v536
    %v935 = vunpack.c.l.b16 %v537
    %v936 = vunpack.c.h.b16 %v537
    %v937 = vunpack.c.l.b16 %v538
    %v938 = vunpack.c.h.b16 %v538
    %v939 = vunpack.c.l.b16 %v539
    %v940 = vunpack.c.h.b16 %v539
    %v941 = vunpack.c.l.b16 %v540
    %v942 = vunpack.c.h.b16 %v540
    %v943 = vunpack.c.l.b16 %v541
    %v944 = vunpack.c.h.b16 %v541
    %v945 = vunpack.c.l.b16 %v542
    %v946 = vunpack.c.h.b16 %v542
    %v947 = vunpack.c.l.b16 %v543
    %v948 = vunpack.c.h.b16 %v543
    %v949 = vunpack.c.l.b16 %v544
    %v950 = vunpack.c.h.b16 %v544
    %v951 = vunpack.c.l.b16 %v545
    %v952 = vunpack.c.h.b16 %v545
    %v953 = vunpack.c.l.b16 %v546
    %v954 = vunpack.c.h.b16 %v546
    %v955 = vpack.c.b16 %v893, %v891
    %v956 = vpack.c.b16 %v894, %v892
    %v957 = vpack.c.b16 %v897, %v895
    %v958 = vpack.c.b16 %v898, %v896
    %v959 = vpack.c.b16 %v901, %v899
    %v960 = vpack.c.b16 %v902, %v900
    %v961 = vpack.c.b16 %v905, %v903
    %v962 = vpack.c.b16 %v906, %v904
    %v963 = vpack.c.b16 %v909, %v907
    %v964 = vpack.c.b16 %v910, %v908
    %v965 = vpack.c.b16 %v913, %v911
    %v966 = vpack.c.b16 %v914, %v912
    %v967 = vpack.c.b16 %v917, %v915
    %v968 = vpack.c.b16 %v918, %v916
    %v969 = vpack.c.b16 %v921, %v919
    %v970 = vpack.c.b16 %v922, %v920
    %v971 = vpack.c.b16 %v925, %v923
    %v972 = vpack.c.b16 %v926, %v924
    %v973 = vpack.c.b16 %v929, %v927
    %v974 = vpack.c.b16 %v930, %v928
    %v975 = vpack.c.b16 %v933, %v931
    %v976 = vpack.c.b16 %v934, %v932
    %v977 = vpack.c.b16 %v937, %v935
    %v978 = vpack.c.b16 %v938, %v936
    %v979 = vpack.c.b16 %v941, %v939
    %v980 = vpack.c.b16 %v942, %v940
    %v981 = vpack.c.b16 %v945, %v943
    %v982 = vpack.c.b16 %v946, %v944
    %v983 = vpack.c.b16 %v949, %v947
    %v984 = vpack.c.b16 %v950, %v948
    %v985 = vpack.c.b16 %v953, %v951
    %v986 = vpack.c.b16 %v954, %v952
    %1019 = vmatpush.bf16.msra.mxu0 %v969
    %1020 = vmatpush.bf16.msra.mxu0 %v967
    %1021 = vmatpush.bf16.msra.mxu0 %v965
    %1022 = vmatpush.bf16.msra.mxu0 %v963
    %1023 = vmatpush.bf16.msra.mxu0 %v961
    %1024 = vmatpush.bf16.msra.mxu0 %v959
    %1025 = vmatpush.bf16.msra.mxu0 %v957
    %1026 = vmatpush.bf16.msra.mxu0 %v955
    %1027 = vmatmul.bf16.gmra.mxu0 %v499
    %v1028 = vpop.f32.mrf.mxu0
    %v1029 = vadd.f32 %v812, %v1028
    %v1030 = vpop.f32.mrf.mxu0
    %v1031 = vadd.f32 %v814, %v1030
    %1032 = vmatmul.bf16.gmra.mxu0 %v500
    %v1033 = vpop.f32.mrf.mxu0
    %v1034 = vadd.f32 %v817, %v1033
    %v1035 = vpop.f32.mrf.mxu0
    %v1036 = vadd.f32 %v819, %v1035
    %1037 = vdwg.mxu0
    %1038 = vmatpush.bf16.msra.mxu0 %v985
    %1039 = vmatpush.bf16.msra.mxu0 %v983
    %1040 = vmatpush.bf16.msra.mxu0 %v981
    %1041 = vmatpush.bf16.msra.mxu0 %v979
    %1042 = vmatpush.bf16.msra.mxu0 %v977
    %1043 = vmatpush.bf16.msra.mxu0 %v975
    %1044 = vmatpush.bf16.msra.mxu0 %v973
    %1045 = vmatpush.bf16.msra.mxu0 %v971
    %1046 = vmatmul.bf16.gmra.mxu0 %v511
    %v1047 = vpop.f32.mrf.mxu0
    %v1048 = vadd.f32 %v1029, %v1047
    %v1049 = vpop.f32.mrf.mxu0
    %v1050 = vadd.f32 %v1031, %v1049
    %1051 = vmatmul.bf16.gmra.mxu0 %v512
    %v1052 = vpop.f32.mrf.mxu0
    %v1053 = vadd.f32 %v1034, %v1052
    %v1054 = vpop.f32.mrf.mxu0
    %v1055 = vadd.f32 %v1036, %v1054
    %1056 = vdwg.mxu0
    %1057 = vmatpush.bf16.msra.mxu0 %v970
    %1058 = vmatpush.bf16.msra.mxu0 %v968
    %1059 = vmatpush.bf16.msra.mxu0 %v966
    %1060 = vmatpush.bf16.msra.mxu0 %v964
    %1061 = vmatpush.bf16.msra.mxu0 %v962
    %1062 = vmatpush.bf16.msra.mxu0 %v960
    %1063 = vmatpush.bf16.msra.mxu0 %v958
    %1064 = vmatpush.bf16.msra.mxu0 %v956
    %1065 = vmatmul.bf16.gmra.mxu0 %v499
    %v1066 = vpop.f32.mrf.mxu0
    %v1067 = vadd.f32 %v850, %v1066
    %v1068 = vpop.f32.mrf.mxu0
    %v1069 = vadd.f32 %v852, %v1068
    %1070 = vmatmul.bf16.gmra.mxu0 %v500
    %v1071 = vpop.f32.mrf.mxu0
    %v1072 = vadd.f32 %v855, %v1071
    %v1073 = vpop.f32.mrf.mxu0
    %v1074 = vadd.f32 %v857, %v1073
    %1075 = vdwg.mxu0
    %1076 = vmatpush.bf16.msra.mxu0 %v986
    %1077 = vmatpush.bf16.msra.mxu0 %v984
    %1078 = vmatpush.bf16.msra.mxu0 %v982
    %1079 = vmatpush.bf16.msra.mxu0 %v980
    %1080 = vmatpush.bf16.msra.mxu0 %v978
    %1081 = vmatpush.bf16.msra.mxu0 %v976
    %1082 = vmatpush.bf16.msra.mxu0 %v974
    %1083 = vmatpush.bf16.msra.mxu0 %v972
    %1084 = vmatmul.bf16.gmra.mxu0 %v511
    %v1085 = vpop.f32.mrf.mxu0
    %v1086 = vadd.f32 %v1067, %v1085
    %v1087 = vpop.f32.mrf.mxu0
    %v1088 = vadd.f32 %v1069, %v1087
    %1089 = vmatmul.bf16.gmra.mxu0 %v512
    %v1090 = vpop.f32.mrf.mxu0
    %v1091 = vadd.f32 %v1072, %v1090
    %v1092 = vpop.f32.mrf.mxu0
    %v1093 = vadd.f32 %v1074, %v1092
    %1094 = vdwg.mxu0
    %v1095 = vrot.slane %v455, 2
    %v1096 = vrot.slane %v456, 2
    %v1097 = vrot.slane %v457, 2
    %v1098 = vrot.slane %v458, 2
    %v1099 = vsel %vm340, %v1097, %v1098
    %v1100 = vsel %vm340, %v1096, %v1097
    %v1101 = vsel %vm340, %v1095, %v1096
    %v1102 = vsel %vm340, %v1098, %v1095
    %v1103 = vsel %vm353, %v1101, 0.0
    %v1104 = vsel %vm354, %v1100, 0.0
    %v1105 = vsel %vm355, %v1099, 0.0
    %v1106 = vsel %vm356, %v1102, 0.0
    %v1107 = vpack.c.bf16 %v1104, %v1103
    %v1108 = vpack.c.bf16 %v1106, %v1105
    %v1109 = vld [vmem:[#allocation2 + $0x200] sm:$0xff]
    %v1110 = vld [vmem:[#allocation2 + $0x208] sm:$0xff]
    %v1111 = vld [vmem:[#allocation2 + $0x210] sm:$0xff]
    %v1112 = vld [vmem:[#allocation2 + $0x218] sm:$0xff]
    %v1113 = vld [vmem:[#allocation2 + $0x220] sm:$0xff]
    %v1114 = vld [vmem:[#allocation2 + $0x228] sm:$0xff]
    %v1115 = vld [vmem:[#allocation2 + $0x230] sm:$0xff]
    %v1116 = vld [vmem:[#allocation2 + $0x238] sm:$0xff]
    %v1117 = vld [vmem:[#allocation2 + $0x240] sm:$0xff]
    %v1118 = vld [vmem:[#allocation2 + $0x248] sm:$0xff]
    %v1119 = vld [vmem:[#allocation2 + $0x250] sm:$0xff]
    %v1120 = vld [vmem:[#allocation2 + $0x258] sm:$0xff]
    %v1121 = vld [vmem:[#allocation2 + $0x260] sm:$0xff]
    %v1122 = vld [vmem:[#allocation2 + $0x268] sm:$0xff]
    %v1123 = vld [vmem:[#allocation2 + $0x270] sm:$0xff]
    %v1124 = vld [vmem:[#allocation2 + $0x278] sm:$0xff]
    %v1141 = vunpack.c.l.b16 %v1109
    %v1142 = vunpack.c.h.b16 %v1109
    %v1143 = vunpack.c.l.b16 %v1110
    %v1144 = vunpack.c.h.b16 %v1110
    %v1145 = vunpack.c.l.b16 %v1111
    %v1146 = vunpack.c.h.b16 %v1111
    %v1147 = vunpack.c.l.b16 %v1112
    %v1148 = vunpack.c.h.b16 %v1112
    %v1149 = vunpack.c.l.b16 %v1113
    %v1150 = vunpack.c.h.b16 %v1113
    %v1151 = vunpack.c.l.b16 %v1114
    %v1152 = vunpack.c.h.b16 %v1114
    %v1153 = vunpack.c.l.b16 %v1115
    %v1154 = vunpack.c.h.b16 %v1115
    %v1155 = vunpack.c.l.b16 %v1116
    %v1156 = vunpack.c.h.b16 %v1116
    %v1157 = vunpack.c.l.b16 %v1117
    %v1158 = vunpack.c.h.b16 %v1117
    %v1159 = vunpack.c.l.b16 %v1118
    %v1160 = vunpack.c.h.b16 %v1118
    %v1161 = vunpack.c.l.b16 %v1119
    %v1162 = vunpack.c.h.b16 %v1119
    %v1163 = vunpack.c.l.b16 %v1120
    %v1164 = vunpack.c.h.b16 %v1120
    %v1165 = vunpack.c.l.b16 %v1121
    %v1166 = vunpack.c.h.b16 %v1121
    %v1167 = vunpack.c.l.b16 %v1122
    %v1168 = vunpack.c.h.b16 %v1122
    %v1169 = vunpack.c.l.b16 %v1123
    %v1170 = vunpack.c.h.b16 %v1123
    %v1171 = vunpack.c.l.b16 %v1124
    %v1172 = vunpack.c.h.b16 %v1124
    %v1173 = vpack.c.b16 %v1143, %v1141
    %v1174 = vpack.c.b16 %v1144, %v1142
    %v1175 = vpack.c.b16 %v1147, %v1145
    %v1176 = vpack.c.b16 %v1148, %v1146
    %v1177 = vpack.c.b16 %v1151, %v1149
    %v1178 = vpack.c.b16 %v1152, %v1150
    %v1179 = vpack.c.b16 %v1155, %v1153
    %v1180 = vpack.c.b16 %v1156, %v1154
    %v1181 = vpack.c.b16 %v1159, %v1157
    %v1182 = vpack.c.b16 %v1160, %v1158
    %v1183 = vpack.c.b16 %v1163, %v1161
    %v1184 = vpack.c.b16 %v1164, %v1162
    %v1185 = vpack.c.b16 %v1167, %v1165
    %v1186 = vpack.c.b16 %v1168, %v1166
    %v1187 = vpack.c.b16 %v1171, %v1169
    %v1188 = vpack.c.b16 %v1172, %v1170
    %1205 = vmatpush.bf16.msra.mxu0 %v1187
    %1206 = vmatpush.bf16.msra.mxu0 %v1185
    %1207 = vmatpush.bf16.msra.mxu0 %v1183
    %1208 = vmatpush.bf16.msra.mxu0 %v1181
    %1209 = vmatpush.bf16.msra.mxu0 %v1179
    %1210 = vmatpush.bf16.msra.mxu0 %v1177
    %1211 = vmatpush.bf16.msra.mxu0 %v1175
    %1212 = vmatpush.bf16.msra.mxu0 %v1173
    %1213 = vmatmul.bf16.gmra.mxu0 %v1107
    %v1214 = vpop.f32.mrf.mxu0
    %v1215 = vadd.f32 0.0, %v1214
    %v1216 = vpop.f32.mrf.mxu0
    %v1217 = vadd.f32 0.0, %v1216
    %1218 = vmatmul.bf16.gmra.mxu0 %v1108
    %v1219 = vpop.f32.mrf.mxu0
    %v1220 = vadd.f32 0.0, %v1219
    %v1221 = vpop.f32.mrf.mxu0
    %v1222 = vadd.f32 0.0, %v1221
    %1223 = vdwg.mxu0
    %1224 = vmatpush.bf16.msra.mxu0 %v1188
    %1225 = vmatpush.bf16.msra.mxu0 %v1186
    %1226 = vmatpush.bf16.msra.mxu0 %v1184
    %1227 = vmatpush.bf16.msra.mxu0 %v1182
    %1228 = vmatpush.bf16.msra.mxu0 %v1180
    %1229 = vmatpush.bf16.msra.mxu0 %v1178
    %1230 = vmatpush.bf16.msra.mxu0 %v1176
    %1231 = vmatpush.bf16.msra.mxu0 %v1174
    %1232 = vmatmul.bf16.gmra.mxu0 %v1107
    %v1233 = vpop.f32.mrf.mxu0
    %v1234 = vadd.f32 0.0, %v1233
    %v1235 = vpop.f32.mrf.mxu0
    %v1236 = vadd.f32 0.0, %v1235
    %1237 = vmatmul.bf16.gmra.mxu0 %v1108
    %v1238 = vpop.f32.mrf.mxu0
    %v1239 = vadd.f32 0.0, %v1238
    %v1240 = vpop.f32.mrf.mxu0
    %v1241 = vadd.f32 0.0, %v1240
    %1242 = vdwg.mxu0
    %v1243 = vadd.f32 %v1048, %v1215
    %v1244 = vadd.f32 %v1086, %v1234
    %v1245 = vadd.f32 %v1050, %v1217
    %v1246 = vadd.f32 %v1088, %v1236
    %v1247 = vadd.f32 %v1053, %v1220
    %v1248 = vadd.f32 %v1091, %v1239
    %v1249 = vadd.f32 %v1055, %v1222
    %v1250 = vadd.f32 %v1093, %v1241
    %v1251 = vld [vmem:[%s5] sm:$0x3]
    %v1252 = vld [vmem:[%s6] sm:$0x3]
    %v1253 = vadd.f32 %v1243, %v1245
    %v1254 = vadd.f32 %v1253, %v1247
    %v1255 = vadd.f32 %v1254, %v1249
    %v1256 = vrot.slane %v1255, 4
    %v1257 = vadd.f32 %v1255, %v1256
    %v1258 = vrot.slane %v1257, 2
    %v1259 = vadd.f32 %v1257, %v1258
    %v1260 = vrot.slane %v1259, 1
    %v1261 = vadd.f32 %v1259, %v1260
    %v1262 = vadd.f32 %v1244, %v1246
    %v1263 = vadd.f32 %v1262, %v1248
    %v1264 = vadd.f32 %v1263, %v1250
    %v1265 = vrot.slane %v1264, 4
    %v1266 = vadd.f32 %v1264, %v1265
    %v1267 = vrot.slane %v1266, 2
    %v1268 = vadd.f32 %v1266, %v1267
    %v1269 = vrot.slane %v1268, 1
    %v1270 = vadd.f32 %v1268, %v1269
    %v1271 = vmul.f32 %v1243, %v1243
    %v1272 = vmul.f32 %v1244, %v1244
    %v1273 = vmul.f32 %v1245, %v1245
    %v1274 = vmul.f32 %v1246, %v1246
    %v1275 = vmul.f32 %v1247, %v1247
    %v1276 = vmul.f32 %v1248, %v1248
    %v1277 = vmul.f32 %v1249, %v1249
    %v1278 = vmul.f32 %v1250, %v1250
    %v1279 = vadd.f32 %v1271, %v1273
    %v1280 = vadd.f32 %v1279, %v1275
    %v1281 = vadd.f32 %v1280, %v1277
    %v1282 = vrot.slane %v1281, 4
    %v1283 = vadd.f32 %v1281, %v1282
    %v1284 = vrot.slane %v1283, 2
    %v1285 = vadd.f32 %v1283, %v1284
    %v1286 = vrot.slane %v1285, 1
    %v1287 = vadd.f32 %v1285, %v1286
    %v1288 = vadd.f32 %v1272, %v1274
    %v1289 = vadd.f32 %v1288, %v1276
    %v1290 = vadd.f32 %v1289, %v1278
    %v1291 = vrot.slane %v1290, 4
    %v1292 = vadd.f32 %v1290, %v1291
    %v1293 = vrot.slane %v1292, 2
    %v1294 = vadd.f32 %v1292, %v1293
    %v1295 = vrot.slane %v1294, 1
    %v1296 = vadd.f32 %v1294, %v1295
    %v1297 = vmul.f32 %v1261, 0.03125
    %v1298 = vmul.f32 %v1270, 0.03125
    %v1299 = vmul.f32 %v1287, 0.03125
    %v1300 = vmul.f32 %v1296, 0.03125
    %v1301 = vmul.f32 %v1297, %v1297
    %v1302 = vmul.f32 %v1298, %v1298
    %v1303 = vsub.f32 %v1299, %v1301
    %v1304 = vsub.f32 %v1300, %v1302
    %v1305 = vadd.f32 %v1303, 1e-05
    %v1306 = vadd.f32 %v1304, 1e-05
    %v1307 = vrsqrt.pop %v1305
    %v1308 = vmul.f32 %v1307, %v1305
    %v1309 = vmul.f32 %v1308, %v1307
    %v1310 = vmul.f32 0.5, %v1309
    %v1311 = vsub.f32 1.5, %v1310
    %v1312 = vmul.f32 %v1307, %v1311
    %vm1313 = vweird.f32 %v1305
    %vm1314 = vweird.f32 %v1307
    %vm1315 = vmor %vm1313, %vm1314
    %v1316 = vsel %vm1315, %v1307, %v1312
    %v1317 = vrsqrt.pop %v1306
    %v1318 = vmul.f32 %v1317, %v1306
    %v1319 = vmul.f32 %v1318, %v1317
    %v1320 = vmul.f32 0.5, %v1319
    %v1321 = vsub.f32 1.5, %v1320
    %v1322 = vmul.f32 %v1317, %v1321
    %vm1323 = vweird.f32 %v1306
    %vm1324 = vweird.f32 %v1317
    %vm1325 = vmor %vm1323, %vm1324
    %v1326 = vsel %vm1325, %v1317, %v1322
    %v1329 = vrot.slane %v1326, 7
    %vm1330 = vcmask 1040384
    %v1331 = vsel %vm1330, %v1316, %v1329
    %v1333 = vmul.f32 %v1251, %v1331
    %v1335 = vperm.slane %v1333, 0
    %v1336 = vperm.slane %v1333, 1
    %v1339 = vmul.f32 %v1297, %v1335
    %v1340 = vmul.f32 %v1298, %v1336
    %v1343 = vrot.slane %v1340, 7
    %v1344 = vsel %vm1330, %v1339, %v1343
    %v1346 = vsub.f32 %v1252, %v1344
    %v1347 = vmul.f32 %v1243, %v1335
    %v1348 = vmul.f32 %v1244, %v1336
    %v1349 = vmul.f32 %v1245, %v1335
    %v1350 = vmul.f32 %v1246, %v1336
    %v1351 = vmul.f32 %v1247, %v1335
    %v1352 = vmul.f32 %v1248, %v1336
    %v1353 = vmul.f32 %v1249, %v1335
    %v1354 = vmul.f32 %v1250, %v1336
    %v1356 = vperm.slane %v1346, 0
    %v1357 = vperm.slane %v1346, 1
    %v1360 = vadd.f32 %v1347, %v1356
    %v1361 = vadd.f32 %v1348, %v1357
    %v1362 = vadd.f32 %v1349, %v1356
    %v1363 = vadd.f32 %v1350, %v1357
    %v1364 = vadd.f32 %v1351, %v1356
    %v1365 = vadd.f32 %v1352, %v1357
    %v1366 = vadd.f32 %v1353, %v1356
    %v1367 = vadd.f32 %v1354, %v1357
    %v1368 = vmax.f32 %v1360, 0.0
    %v1369 = vmax.f32 %v1361, 0.0
    %v1370 = vmax.f32 %v1362, 0.0
    %v1371 = vmax.f32 %v1363, 0.0
    %v1372 = vmax.f32 %v1364, 0.0
    %v1373 = vmax.f32 %v1365, 0.0
    %v1374 = vmax.f32 %v1366, 0.0
    %v1375 = vmax.f32 %v1367, 0.0
    %v1376 = vrot.slane %v1368, 7
    %v1377 = vrot.slane %v1369, 7
    %v1378 = vrot.slane %v1370, 7
    %v1379 = vrot.slane %v1371, 7
    %v1380 = vrot.slane %v1372, 7
    %v1381 = vrot.slane %v1373, 7
    %v1382 = vrot.slane %v1374, 7
    %v1383 = vrot.slane %v1375, 7
    %v1384 = vsel %vm263, %v1380, %v1382
    %v1385 = vsel %vm263, %v1381, %v1383
    %v1386 = vsel %vm263, %v1378, %v1380
    %v1387 = vsel %vm263, %v1379, %v1381
    %v1388 = vsel %vm263, %v1376, %v1378
    %v1389 = vsel %vm263, %v1377, %v1379
    %v1390 = vsel %vm263, %v1382, %v1376
    %v1391 = vsel %vm263, %v1383, %v1377
    %v1392 = vsel %vm276, %v1390, 0.0
    %v1393 = vsel %vm276, %v1391, 0.0
    %v1394 = vsel %vm277, %v1388, 0.0
    %v1395 = vsel %vm277, %v1389, 0.0
    %v1396 = vsel %vm278, %v1386, 0.0
    %v1397 = vsel %vm278, %v1387, 0.0
    %v1398 = vsel %vm279, %v1384, 0.0
    %v1399 = vsel %vm279, %v1385, 0.0
    %v1400 = vpack.c.bf16 %v1394, %v1392
    %v1401 = vpack.c.bf16 %v1395, %v1393
    %v1402 = vpack.c.bf16 %v1398, %v1396
    %v1403 = vpack.c.bf16 %v1399, %v1397
    %v1404 = vld [vmem:[#allocation5] sm:$0xf]
    %v1405 = vld [vmem:[#allocation5 + $0x4] sm:$0xf]
    %v1406 = vld [vmem:[#allocation5 + $0x8] sm:$0xf]
    %v1407 = vld [vmem:[#allocation5 + $0xc] sm:$0xf]
    %v1408 = vld [vmem:[#allocation5 + $0x10] sm:$0xf]
    %v1409 = vld [vmem:[#allocation5 + $0x14] sm:$0xf]
    %v1410 = vld [vmem:[#allocation5 + $0x18] sm:$0xf]
    %v1411 = vld [vmem:[#allocation5 + $0x1c] sm:$0xf]
    %v1412 = vld [vmem:[#allocation5 + $0x20] sm:$0xf]
    %v1413 = vld [vmem:[#allocation5 + $0x24] sm:$0xf]
    %v1414 = vld [vmem:[#allocation5 + $0x28] sm:$0xf]
    %v1415 = vld [vmem:[#allocation5 + $0x2c] sm:$0xf]
    %v1416 = vld [vmem:[#allocation5 + $0x30] sm:$0xf]
    %v1417 = vld [vmem:[#allocation5 + $0x34] sm:$0xf]
    %v1418 = vld [vmem:[#allocation5 + $0x38] sm:$0xf]
    %v1419 = vld [vmem:[#allocation5 + $0x3c] sm:$0xf]
    %v1420 = vld [vmem:[#allocation5 + $0x40] sm:$0xf]
    %v1421 = vld [vmem:[#allocation5 + $0x44] sm:$0xf]
    %v1422 = vld [vmem:[#allocation5 + $0x48] sm:$0xf]
    %v1423 = vld [vmem:[#allocation5 + $0x4c] sm:$0xf]
    %v1424 = vld [vmem:[#allocation5 + $0x50] sm:$0xf]
    %v1425 = vld [vmem:[#allocation5 + $0x54] sm:$0xf]
    %v1426 = vld [vmem:[#allocation5 + $0x58] sm:$0xf]
    %v1427 = vld [vmem:[#allocation5 + $0x5c] sm:$0xf]
    %v1428 = vld [vmem:[#allocation5 + $0x60] sm:$0xf]
    %v1429 = vld [vmem:[#allocation5 + $0x64] sm:$0xf]
    %v1430 = vld [vmem:[#allocation5 + $0x68] sm:$0xf]
    %v1431 = vld [vmem:[#allocation5 + $0x6c] sm:$0xf]
    %v1432 = vld [vmem:[#allocation5 + $0x70] sm:$0xf]
    %v1433 = vld [vmem:[#allocation5 + $0x74] sm:$0xf]
    %v1434 = vld [vmem:[#allocation5 + $0x78] sm:$0xf]
    %v1435 = vld [vmem:[#allocation5 + $0x7c] sm:$0xf]
    %v1436 = vpack.c.bf16 %v1370, %v1368
    %v1437 = vpack.c.bf16 %v1371, %v1369
    %v1438 = vpack.c.bf16 %v1374, %v1372
    %v1439 = vpack.c.bf16 %v1375, %v1373
    %v1440 = vld [vmem:[#allocation5 + $0x80] sm:$0xf]
    %v1441 = vld [vmem:[#allocation5 + $0x84] sm:$0xf]
    %v1442 = vld [vmem:[#allocation5 + $0x88] sm:$0xf]
    %v1443 = vld [vmem:[#allocation5 + $0x8c] sm:$0xf]
    %v1444 = vld [vmem:[#allocation5 + $0x90] sm:$0xf]
    %v1445 = vld [vmem:[#allocation5 + $0x94] sm:$0xf]
    %v1446 = vld [vmem:[#allocation5 + $0x98] sm:$0xf]
    %v1447 = vld [vmem:[#allocation5 + $0x9c] sm:$0xf]
    %v1448 = vld [vmem:[#allocation5 + $0xa0] sm:$0xf]
    %v1449 = vld [vmem:[#allocation5 + $0xa4] sm:$0xf]
    %v1450 = vld [vmem:[#allocation5 + $0xa8] sm:$0xf]
    %v1451 = vld [vmem:[#allocation5 + $0xac] sm:$0xf]
    %v1452 = vld [vmem:[#allocation5 + $0xb0] sm:$0xf]
    %v1453 = vld [vmem:[#allocation5 + $0xb4] sm:$0xf]
    %v1454 = vld [vmem:[#allocation5 + $0xb8] sm:$0xf]
    %v1455 = vld [vmem:[#allocation5 + $0xbc] sm:$0xf]
    %v1456 = vld [vmem:[#allocation5 + $0xc0] sm:$0xf]
    %v1457 = vld [vmem:[#allocation5 + $0xc4] sm:$0xf]
    %v1458 = vld [vmem:[#allocation5 + $0xc8] sm:$0xf]
    %v1459 = vld [vmem:[#allocation5 + $0xcc] sm:$0xf]
    %v1460 = vld [vmem:[#allocation5 + $0xd0] sm:$0xf]
    %v1461 = vld [vmem:[#allocation5 + $0xd4] sm:$0xf]
    %v1462 = vld [vmem:[#allocation5 + $0xd8] sm:$0xf]
    %v1463 = vld [vmem:[#allocation5 + $0xdc] sm:$0xf]
    %v1464 = vld [vmem:[#allocation5 + $0xe0] sm:$0xf]
    %v1465 = vld [vmem:[#allocation5 + $0xe4] sm:$0xf]
    %v1466 = vld [vmem:[#allocation5 + $0xe8] sm:$0xf]
    %v1467 = vld [vmem:[#allocation5 + $0xec] sm:$0xf]
    %v1468 = vld [vmem:[#allocation5 + $0xf0] sm:$0xf]
    %v1469 = vld [vmem:[#allocation5 + $0xf4] sm:$0xf]
    %v1470 = vld [vmem:[#allocation5 + $0xf8] sm:$0xf]
    %v1471 = vld [vmem:[#allocation5 + $0xfc] sm:$0xf]
    %v1504 = vunpack.c.l.b16 %v1440
    %v1505 = vunpack.c.l.b16 %v1441
    %v1506 = vunpack.c.l.b16 %v1442
    %v1507 = vunpack.c.l.b16 %v1443
    %v1508 = vunpack.c.l.b16 %v1444
    %v1509 = vunpack.c.l.b16 %v1445
    %v1510 = vunpack.c.l.b16 %v1446
    %v1511 = vunpack.c.l.b16 %v1447
    %v1512 = vunpack.c.l.b16 %v1448
    %v1513 = vunpack.c.l.b16 %v1449
    %v1514 = vunpack.c.l.b16 %v1450
    %v1515 = vunpack.c.l.b16 %v1451
    %v1516 = vunpack.c.l.b16 %v1452
    %v1517 = vunpack.c.l.b16 %v1453
    %v1518 = vunpack.c.l.b16 %v1454
    %v1519 = vunpack.c.l.b16 %v1455
    %v1520 = vunpack.c.l.b16 %v1456
    %v1521 = vunpack.c.l.b16 %v1457
    %v1522 = vunpack.c.l.b16 %v1458
    %v1523 = vunpack.c.l.b16 %v1459
    %v1524 = vunpack.c.l.b16 %v1460
    %v1525 = vunpack.c.l.b16 %v1461
    %v1526 = vunpack.c.l.b16 %v1462
    %v1527 = vunpack.c.l.b16 %v1463
    %v1528 = vunpack.c.l.b16 %v1464
    %v1529 = vunpack.c.l.b16 %v1465
    %v1530 = vunpack.c.l.b16 %v1466
    %v1531 = vunpack.c.l.b16 %v1467
    %v1532 = vunpack.c.l.b16 %v1468
    %v1533 = vunpack.c.l.b16 %v1469
    %v1534 = vunpack.c.l.b16 %v1470
    %v1535 = vunpack.c.l.b16 %v1471
    %v1536 = vpack.c.b16 %v1505, %v1504
    %v1537 = vpack.c.b16 %v1507, %v1506
    %v1538 = vpack.c.b16 %v1509, %v1508
    %v1539 = vpack.c.b16 %v1511, %v1510
    %v1540 = vpack.c.b16 %v1513, %v1512
    %v1541 = vpack.c.b16 %v1515, %v1514
    %v1542 = vpack.c.b16 %v1517, %v1516
    %v1543 = vpack.c.b16 %v1519, %v1518
    %v1544 = vpack.c.b16 %v1521, %v1520
    %v1545 = vpack.c.b16 %v1523, %v1522
    %v1546 = vpack.c.b16 %v1525, %v1524
    %v1547 = vpack.c.b16 %v1527, %v1526
    %v1548 = vpack.c.b16 %v1529, %v1528
    %v1549 = vpack.c.b16 %v1531, %v1530
    %v1550 = vpack.c.b16 %v1533, %v1532
    %v1551 = vpack.c.b16 %v1535, %v1534
    %1568 = vmatpush.bf16.msra.mxu0 %v1543
    %1569 = vmatpush.bf16.msra.mxu0 %v1542
    %1570 = vmatpush.bf16.msra.mxu0 %v1541
    %1571 = vmatpush.bf16.msra.mxu0 %v1540
    %1572 = vmatpush.bf16.msra.mxu0 %v1539
    %1573 = vmatpush.bf16.msra.mxu0 %v1538
    %1574 = vmatpush.bf16.msra.mxu0 %v1537
    %1575 = vmatpush.bf16.msra.mxu0 %v1536
    %1576 = vmatmul.bf16.gmra.mxu0 %v1436
    %v1577 = vpop.f32.mrf.mxu0
    %v1578 = vadd.f32 0.0, %v1577
    %v1579 = vpop.f32.mrf.mxu0
    %v1580 = vadd.f32 0.0, %v1579
    %1581 = vmatmul.bf16.gmra.mxu0 %v1438
    %v1582 = vpop.f32.mrf.mxu0
    %v1583 = vadd.f32 0.0, %v1582
    %v1584 = vpop.f32.mrf.mxu0
    %v1585 = vadd.f32 0.0, %v1584
    %1586 = vdwg.mxu0
    %1587 = vmatpush.bf16.msra.mxu0 %v1551
    %1588 = vmatpush.bf16.msra.mxu0 %v1550
    %1589 = vmatpush.bf16.msra.mxu0 %v1549
    %1590 = vmatpush.bf16.msra.mxu0 %v1548
    %1591 = vmatpush.bf16.msra.mxu0 %v1547
    %1592 = vmatpush.bf16.msra.mxu0 %v1546
    %1593 = vmatpush.bf16.msra.mxu0 %v1545
    %1594 = vmatpush.bf16.msra.mxu0 %v1544
    %1595 = vmatmul.bf16.gmra.mxu0 %v1437
    %v1596 = vpop.f32.mrf.mxu0
    %v1597 = vadd.f32 %v1578, %v1596
    %v1598 = vpop.f32.mrf.mxu0
    %v1599 = vadd.f32 %v1580, %v1598
    %1600 = vmatmul.bf16.gmra.mxu0 %v1439
    %v1601 = vpop.f32.mrf.mxu0
    %v1602 = vadd.f32 %v1583, %v1601
    %v1603 = vpop.f32.mrf.mxu0
    %v1604 = vadd.f32 %v1585, %v1603
    %1605 = vdwg.mxu0
    %v1638 = vunpack.c.l.b16 %v1404
    %v1639 = vunpack.c.l.b16 %v1405
    %v1640 = vunpack.c.l.b16 %v1406
    %v1641 = vunpack.c.l.b16 %v1407
    %v1642 = vunpack.c.l.b16 %v1408
    %v1643 = vunpack.c.l.b16 %v1409
    %v1644 = vunpack.c.l.b16 %v1410
    %v1645 = vunpack.c.l.b16 %v1411
    %v1646 = vunpack.c.l.b16 %v1412
    %v1647 = vunpack.c.l.b16 %v1413
    %v1648 = vunpack.c.l.b16 %v1414
    %v1649 = vunpack.c.l.b16 %v1415
    %v1650 = vunpack.c.l.b16 %v1416
    %v1651 = vunpack.c.l.b16 %v1417
    %v1652 = vunpack.c.l.b16 %v1418
    %v1653 = vunpack.c.l.b16 %v1419
    %v1654 = vunpack.c.l.b16 %v1420
    %v1655 = vunpack.c.l.b16 %v1421
    %v1656 = vunpack.c.l.b16 %v1422
    %v1657 = vunpack.c.l.b16 %v1423
    %v1658 = vunpack.c.l.b16 %v1424
    %v1659 = vunpack.c.l.b16 %v1425
    %v1660 = vunpack.c.l.b16 %v1426
    %v1661 = vunpack.c.l.b16 %v1427
    %v1662 = vunpack.c.l.b16 %v1428
    %v1663 = vunpack.c.l.b16 %v1429
    %v1664 = vunpack.c.l.b16 %v1430
    %v1665 = vunpack.c.l.b16 %v1431
    %v1666 = vunpack.c.l.b16 %v1432
    %v1667 = vunpack.c.l.b16 %v1433
    %v1668 = vunpack.c.l.b16 %v1434
    %v1669 = vunpack.c.l.b16 %v1435
    %v1670 = vpack.c.b16 %v1639, %v1638
    %v1671 = vpack.c.b16 %v1641, %v1640
    %v1672 = vpack.c.b16 %v1643, %v1642
    %v1673 = vpack.c.b16 %v1645, %v1644
    %v1674 = vpack.c.b16 %v1647, %v1646
    %v1675 = vpack.c.b16 %v1649, %v1648
    %v1676 = vpack.c.b16 %v1651, %v1650
    %v1677 = vpack.c.b16 %v1653, %v1652
    %v1678 = vpack.c.b16 %v1655, %v1654
    %v1679 = vpack.c.b16 %v1657, %v1656
    %v1680 = vpack.c.b16 %v1659, %v1658
    %v1681 = vpack.c.b16 %v1661, %v1660
    %v1682 = vpack.c.b16 %v1663, %v1662
    %v1683 = vpack.c.b16 %v1665, %v1664
    %v1684 = vpack.c.b16 %v1667, %v1666
    %v1685 = vpack.c.b16 %v1669, %v1668
    %1702 = vmatpush.bf16.msra.mxu0 %v1677
    %1703 = vmatpush.bf16.msra.mxu0 %v1676
    %1704 = vmatpush.bf16.msra.mxu0 %v1675
    %1705 = vmatpush.bf16.msra.mxu0 %v1674
    %1706 = vmatpush.bf16.msra.mxu0 %v1673
    %1707 = vmatpush.bf16.msra.mxu0 %v1672
    %1708 = vmatpush.bf16.msra.mxu0 %v1671
    %1709 = vmatpush.bf16.msra.mxu0 %v1670
    %1710 = vmatmul.bf16.gmra.mxu0 %v1400
    %v1711 = vpop.f32.mrf.mxu0
    %v1712 = vadd.f32 %v1597, %v1711
    %v1713 = vpop.f32.mrf.mxu0
    %v1714 = vadd.f32 %v1599, %v1713
    %1715 = vmatmul.bf16.gmra.mxu0 %v1402
    %v1716 = vpop.f32.mrf.mxu0
    %v1717 = vadd.f32 %v1602, %v1716
    %v1718 = vpop.f32.mrf.mxu0
    %v1719 = vadd.f32 %v1604, %v1718
    %1720 = vdwg.mxu0
    %1721 = vmatpush.bf16.msra.mxu0 %v1685
    %1722 = vmatpush.bf16.msra.mxu0 %v1684
    %1723 = vmatpush.bf16.msra.mxu0 %v1683
    %1724 = vmatpush.bf16.msra.mxu0 %v1682
    %1725 = vmatpush.bf16.msra.mxu0 %v1681
    %1726 = vmatpush.bf16.msra.mxu0 %v1680
    %1727 = vmatpush.bf16.msra.mxu0 %v1679
    %1728 = vmatpush.bf16.msra.mxu0 %v1678
    %1729 = vmatmul.bf16.gmra.mxu0 %v1401
    %v1730 = vpop.f32.mrf.mxu0
    %v1731 = vadd.f32 %v1712, %v1730
    %v1732 = vpop.f32.mrf.mxu0
    %v1733 = vadd.f32 %v1714, %v1732
    %1734 = vmatmul.bf16.gmra.mxu0 %v1403
    %v1735 = vpop.f32.mrf.mxu0
    %v1736 = vadd.f32 %v1717, %v1735
    %v1737 = vpop.f32.mrf.mxu0
    %v1738 = vadd.f32 %v1719, %v1737
    %1739 = vdwg.mxu0
    %v1740 = vrot.slane %v1368, 1
    %v1741 = vrot.slane %v1369, 1
    %v1742 = vrot.slane %v1370, 1
    %v1743 = vrot.slane %v1371, 1
    %v1744 = vrot.slane %v1372, 1
    %v1745 = vrot.slane %v1373, 1
    %v1746 = vrot.slane %v1374, 1
    %v1747 = vrot.slane %v1375, 1
    %v1748 = vsel %vm306, %v1744, %v1746
    %v1749 = vsel %vm306, %v1745, %v1747
    %v1750 = vsel %vm306, %v1742, %v1744
    %v1751 = vsel %vm306, %v1743, %v1745
    %v1752 = vsel %vm306, %v1740, %v1742
    %v1753 = vsel %vm306, %v1741, %v1743
    %v1754 = vsel %vm306, %v1746, %v1740
    %v1755 = vsel %vm306, %v1747, %v1741
    %v1756 = vsel %vm319, %v1752, 0.0
    %v1757 = vsel %vm319, %v1753, 0.0
    %v1758 = vsel %vm320, %v1750, 0.0
    %v1759 = vsel %vm320, %v1751, 0.0
    %v1760 = vsel %vm321, %v1748, 0.0
    %v1761 = vsel %vm321, %v1749, 0.0
    %v1762 = vsel %vm322, %v1754, 0.0
    %v1763 = vsel %vm322, %v1755, 0.0
    %v1764 = vpack.c.bf16 %v1758, %v1756
    %v1765 = vpack.c.bf16 %v1759, %v1757
    %v1766 = vpack.c.bf16 %v1762, %v1760
    %v1767 = vpack.c.bf16 %v1763, %v1761
    %v1768 = vld [vmem:[#allocation5 + $0x100] sm:$0xf]
    %v1769 = vld [vmem:[#allocation5 + $0x104] sm:$0xf]
    %v1770 = vld [vmem:[#allocation5 + $0x108] sm:$0xf]
    %v1771 = vld [vmem:[#allocation5 + $0x10c] sm:$0xf]
    %v1772 = vld [vmem:[#allocation5 + $0x110] sm:$0xf]
    %v1773 = vld [vmem:[#allocation5 + $0x114] sm:$0xf]
    %v1774 = vld [vmem:[#allocation5 + $0x118] sm:$0xf]
    %v1775 = vld [vmem:[#allocation5 + $0x11c] sm:$0xf]
    %v1776 = vld [vmem:[#allocation5 + $0x120] sm:$0xf]
    %v1777 = vld [vmem:[#allocation5 + $0x124] sm:$0xf]
    %v1778 = vld [vmem:[#allocation5 + $0x128] sm:$0xf]
    %v1779 = vld [vmem:[#allocation5 + $0x12c] sm:$0xf]
    %v1780 = vld [vmem:[#allocation5 + $0x130] sm:$0xf]
    %v1781 = vld [vmem:[#allocation5 + $0x134] sm:$0xf]
    %v1782 = vld [vmem:[#allocation5 + $0x138] sm:$0xf]
    %v1783 = vld [vmem:[#allocation5 + $0x13c] sm:$0xf]
    %v1784 = vld [vmem:[#allocation5 + $0x140] sm:$0xf]
    %v1785 = vld [vmem:[#allocation5 + $0x144] sm:$0xf]
    %v1786 = vld [vmem:[#allocation5 + $0x148] sm:$0xf]
    %v1787 = vld [vmem:[#allocation5 + $0x14c] sm:$0xf]
    %v1788 = vld [vmem:[#allocation5 + $0x150] sm:$0xf]
    %v1789 = vld [vmem:[#allocation5 + $0x154] sm:$0xf]
    %v1790 = vld [vmem:[#allocation5 + $0x158] sm:$0xf]
    %v1791 = vld [vmem:[#allocation5 + $0x15c] sm:$0xf]
    %v1792 = vld [vmem:[#allocation5 + $0x160] sm:$0xf]
    %v1793 = vld [vmem:[#allocation5 + $0x164] sm:$0xf]
    %v1794 = vld [vmem:[#allocation5 + $0x168] sm:$0xf]
    %v1795 = vld [vmem:[#allocation5 + $0x16c] sm:$0xf]
    %v1796 = vld [vmem:[#allocation5 + $0x170] sm:$0xf]
    %v1797 = vld [vmem:[#allocation5 + $0x174] sm:$0xf]
    %v1798 = vld [vmem:[#allocation5 + $0x178] sm:$0xf]
    %v1799 = vld [vmem:[#allocation5 + $0x17c] sm:$0xf]
    %v1832 = vunpack.c.l.b16 %v1768
    %v1833 = vunpack.c.l.b16 %v1769
    %v1834 = vunpack.c.l.b16 %v1770
    %v1835 = vunpack.c.l.b16 %v1771
    %v1836 = vunpack.c.l.b16 %v1772
    %v1837 = vunpack.c.l.b16 %v1773
    %v1838 = vunpack.c.l.b16 %v1774
    %v1839 = vunpack.c.l.b16 %v1775
    %v1840 = vunpack.c.l.b16 %v1776
    %v1841 = vunpack.c.l.b16 %v1777
    %v1842 = vunpack.c.l.b16 %v1778
    %v1843 = vunpack.c.l.b16 %v1779
    %v1844 = vunpack.c.l.b16 %v1780
    %v1845 = vunpack.c.l.b16 %v1781
    %v1846 = vunpack.c.l.b16 %v1782
    %v1847 = vunpack.c.l.b16 %v1783
    %v1848 = vunpack.c.l.b16 %v1784
    %v1849 = vunpack.c.l.b16 %v1785
    %v1850 = vunpack.c.l.b16 %v1786
    %v1851 = vunpack.c.l.b16 %v1787
    %v1852 = vunpack.c.l.b16 %v1788
    %v1853 = vunpack.c.l.b16 %v1789
    %v1854 = vunpack.c.l.b16 %v1790
    %v1855 = vunpack.c.l.b16 %v1791
    %v1856 = vunpack.c.l.b16 %v1792
    %v1857 = vunpack.c.l.b16 %v1793
    %v1858 = vunpack.c.l.b16 %v1794
    %v1859 = vunpack.c.l.b16 %v1795
    %v1860 = vunpack.c.l.b16 %v1796
    %v1861 = vunpack.c.l.b16 %v1797
    %v1862 = vunpack.c.l.b16 %v1798
    %v1863 = vunpack.c.l.b16 %v1799
    %v1864 = vpack.c.b16 %v1833, %v1832
    %v1865 = vpack.c.b16 %v1835, %v1834
    %v1866 = vpack.c.b16 %v1837, %v1836
    %v1867 = vpack.c.b16 %v1839, %v1838
    %v1868 = vpack.c.b16 %v1841, %v1840
    %v1869 = vpack.c.b16 %v1843, %v1842
    %v1870 = vpack.c.b16 %v1845, %v1844
    %v1871 = vpack.c.b16 %v1847, %v1846
    %v1872 = vpack.c.b16 %v1849, %v1848
    %v1873 = vpack.c.b16 %v1851, %v1850
    %v1874 = vpack.c.b16 %v1853, %v1852
    %v1875 = vpack.c.b16 %v1855, %v1854
    %v1876 = vpack.c.b16 %v1857, %v1856
    %v1877 = vpack.c.b16 %v1859, %v1858
    %v1878 = vpack.c.b16 %v1861, %v1860
    %v1879 = vpack.c.b16 %v1863, %v1862
    %1896 = vmatpush.bf16.msra.mxu0 %v1871
    %1897 = vmatpush.bf16.msra.mxu0 %v1870
    %1898 = vmatpush.bf16.msra.mxu0 %v1869
    %1899 = vmatpush.bf16.msra.mxu0 %v1868
    %1900 = vmatpush.bf16.msra.mxu0 %v1867
    %1901 = vmatpush.bf16.msra.mxu0 %v1866
    %1902 = vmatpush.bf16.msra.mxu0 %v1865
    %1903 = vmatpush.bf16.msra.mxu0 %v1864
    %1904 = vmatmul.bf16.gmra.mxu0 %v1764
    %v1905 = vpop.f32.mrf.mxu0
    %v1906 = vadd.f32 0.0, %v1905
    %v1907 = vpop.f32.mrf.mxu0
    %v1908 = vadd.f32 0.0, %v1907
    %1909 = vmatmul.bf16.gmra.mxu0 %v1766
    %v1910 = vpop.f32.mrf.mxu0
    %v1911 = vadd.f32 0.0, %v1910
    %v1912 = vpop.f32.mrf.mxu0
    %v1913 = vadd.f32 0.0, %v1912
    %1914 = vdwg.mxu0
    %1915 = vmatpush.bf16.msra.mxu0 %v1879
    %1916 = vmatpush.bf16.msra.mxu0 %v1878
    %1917 = vmatpush.bf16.msra.mxu0 %v1877
    %1918 = vmatpush.bf16.msra.mxu0 %v1876
    %1919 = vmatpush.bf16.msra.mxu0 %v1875
    %1920 = vmatpush.bf16.msra.mxu0 %v1874
    %1921 = vmatpush.bf16.msra.mxu0 %v1873
    %1922 = vmatpush.bf16.msra.mxu0 %v1872
    %1923 = vmatmul.bf16.gmra.mxu0 %v1765
    %v1924 = vpop.f32.mrf.mxu0
    %v1925 = vadd.f32 %v1906, %v1924
    %v1926 = vpop.f32.mrf.mxu0
    %v1927 = vadd.f32 %v1908, %v1926
    %1928 = vmatmul.bf16.gmra.mxu0 %v1767
    %v1929 = vpop.f32.mrf.mxu0
    %v1930 = vadd.f32 %v1911, %v1929
    %v1931 = vpop.f32.mrf.mxu0
    %v1932 = vadd.f32 %v1913, %v1931
    %1933 = vdwg.mxu0
    %v1934 = vadd.f32 %v1731, %v1925
    %v1935 = vadd.f32 %v1733, %v1927
    %v1936 = vadd.f32 %v1736, %v1930
    %v1937 = vadd.f32 %v1738, %v1932
    %v1938 = vld [vmem:[%s8] sm:$0x1]
    %v1939 = vld [vmem:[%s9] sm:$0x1]
    %v1940 = vadd.f32 %v1934, %v1935
    %v1941 = vadd.f32 %v1940, %v1936
    %v1942 = vadd.f32 %v1941, %v1937
    %v1943 = vrot.slane %v1942, 4
    %v1944 = vadd.f32 %v1942, %v1943
    %v1945 = vrot.slane %v1944, 2
    %v1946 = vadd.f32 %v1944, %v1945
    %v1947 = vrot.slane %v1946, 1
    %v1948 = vadd.f32 %v1946, %v1947
    %v1949 = vmul.f32 %v1934, %v1934
    %v1950 = vmul.f32 %v1935, %v1935
    %v1951 = vmul.f32 %v1936, %v1936
    %v1952 = vmul.f32 %v1937, %v1937
    %v1953 = vadd.f32 %v1949, %v1950
    %v1954 = vadd.f32 %v1953, %v1951
    %v1955 = vadd.f32 %v1954, %v1952
    %v1956 = vrot.slane %v1955, 4
    %v1957 = vadd.f32 %v1955, %v1956
    %v1958 = vrot.slane %v1957, 2
    %v1959 = vadd.f32 %v1957, %v1958
    %v1960 = vrot.slane %v1959, 1
    %v1961 = vadd.f32 %v1959, %v1960
    %v1962 = vmul.f32 %v1948, 0.03125
    %v1963 = vmul.f32 %v1961, 0.03125
    %v1964 = vmul.f32 %v1962, %v1962
    %v1965 = vsub.f32 %v1963, %v1964
    %v1966 = vadd.f32 %v1965, 1e-05
    %v1967 = vrsqrt.pop %v1966
    %v1968 = vmul.f32 %v1967, %v1966
    %v1969 = vmul.f32 %v1968, %v1967
    %v1970 = vmul.f32 0.5, %v1969
    %v1971 = vsub.f32 1.5, %v1970
    %v1972 = vmul.f32 %v1967, %v1971
    %vm1973 = vweird.f32 %v1966
    %vm1974 = vweird.f32 %v1967
    %vm1975 = vmor %vm1973, %vm1974
    %v1976 = vsel %vm1975, %v1967, %v1972
    %v1977 = vmul.f32 %v1938, %v1976
    %v1978 = vmul.f32 %v1962, %v1977
    %v1979 = vsub.f32 %v1939, %v1978
    %v1981 = vperm.slane %v1977, 0
    %v1983 = vmul.f32 %v1934, %v1981
    %v1984 = vmul.f32 %v1935, %v1981
    %v1985 = vmul.f32 %v1936, %v1981
    %v1986 = vmul.f32 %v1937, %v1981
    %v1988 = vperm.slane %v1979, 0
    %v1990 = vadd.f32 %v1983, %v1988
    %v1991 = vadd.f32 %v1984, %v1988
    %v1992 = vadd.f32 %v1985, %v1988
    %v1993 = vadd.f32 %v1986, %v1988
    %v1994 = vmax.f32 %v1990, 0.0
    %v1995 = vmax.f32 %v1991, 0.0
    %v1996 = vmax.f32 %v1992, 0.0
    %v1997 = vmax.f32 %v1993, 0.0
    %v1998 = vadd.f32 %v1994, %v1995
    %v1999 = vrot.slane %v1998, 4
    %v2000 = vadd.f32 %v1998, %v1999
    %v2001 = vrot.slane %v2000, 2
    %v2002 = vadd.f32 %v2000, %v2001
    %v2003 = vrot.slane %v2002, 1
    %v2004 = vadd.f32 %v2002, %v2003
    %v2005 = vadd.f32 %v1996, %v1997
    %v2006 = vrot.slane %v2005, 4
    %v2007 = vadd.f32 %v2005, %v2006
    %v2008 = vrot.slane %v2007, 2
    %v2009 = vadd.f32 %v2007, %v2008
    %v2010 = vrot.slane %v2009, 1
    %v2011 = vadd.f32 %v2009, %v2010
    %v2012 = vmul.f32 %v2004, 0.0625
    %v2013 = vmul.f32 %v2011, 0.0625
    %v2014 = vld [vmem:[%s10] sm:$0xff]
    %v2015 = vld [vmem:[%s10 + $0x8] sm:$0xff]
    %v2016 = vld [vmem:[%s10 + $0x10] sm:$0xff]
    %v2017 = vld [vmem:[%s10 + $0x18] sm:$0xff]
    %v2018 = vld [vmem:[%s10 + $0x20] sm:$0xff]
    %v2019 = vld [vmem:[%s10 + $0x28] sm:$0xff]
    %v2020 = vld [vmem:[%s10 + $0x30] sm:$0xff]
    %v2021 = vld [vmem:[%s10 + $0x38] sm:$0xff]
    %v2022 = vld [vmem:[%s10 + $0x40] sm:$0xff]
    %v2023 = vld [vmem:[%s10 + $0x48] sm:$0xff]
    %v2024 = vld [vmem:[%s10 + $0x50] sm:$0xff]
    %v2025 = vld [vmem:[%s10 + $0x58] sm:$0xff]
    %v2026 = vld [vmem:[%s10 + $0x60] sm:$0xff]
    %v2027 = vld [vmem:[%s10 + $0x68] sm:$0xff]
    %v2028 = vld [vmem:[%s10 + $0x70] sm:$0xff]
    %v2029 = vld [vmem:[%s10 + $0x78] sm:$0xff]
    %v2030 = vld [vmem:[%s11] sm:$0x1]
    %v2032 = vperm.slane %v2030, 0
    %vm2036 = vcmask 1041409
    %v2037 = vsel %vm2036, %v2013, %v2012
    %2039 = vmatpush.msra.mxu0 %v2029
    %2040 = vmatpush.msra.mxu0 %v2028
    %2041 = vmatpush.msra.mxu0 %v2027
    %2042 = vmatpush.msra.mxu0 %v2026
    %2043 = vmatpush.msra.mxu0 %v2025
    %2044 = vmatpush.msra.mxu0 %v2024
    %2045 = vmatpush.msra.mxu0 %v2023
    %2046 = vmatpush.msra.mxu0 %v2022
    %2047 = vmatpush.msra.mxu0 %v2021
    %2048 = vmatpush.msra.mxu0 %v2020
    %2049 = vmatpush.msra.mxu0 %v2019
    %2050 = vmatpush.msra.mxu0 %v2018
    %2051 = vmatpush.msra.mxu0 %v2017
    %2052 = vmatpush.msra.mxu0 %v2016
    %2053 = vmatpush.msra.mxu0 %v2015
    %2054 = vmatpush.msra.mxu0 %v2014
    %2055 = vmatmul.f32.gmra.mxu0 %v2037
    %v2056 = vpop.f32.mrf.mxu0
    %v2057 = vadd.f32 %v2032, %v2056
    %2058 = vdwg.mxu0
    %vm2059 = vcmask 25600
    %2060 = vst.msk [vmem:[#allocation7] sm:$0x3] %vm2059, %v2057
    // Predicated region
    $region58: #{tpu_custom_call.1} parent=1 // pred_check
      _
    $region59: #{tpu_custom_call.1} parent=1 // pred_check_branch
      %2062 = sbr.rel (0) target = $region61
    $region60: #{tpu_custom_call.1} parent=1 // pred_region
      %2064 = vsyncadd [#allocation4], 0
      %s2066 = sshll.u32 [#allocation7], 4
      %s2067 = int_to_ptr.vmem [resolvable:$true] %s2066
      %s2068 = sshll.u32 %s12, 4
      %s2069 = int_to_ptr.hbm [resolvable:$true] %s2068
      %2071 = dma.vmem_to_hbm [thread:$0]  %s2067, 32, %s2069, [#allocation4]
    $region61: #{tpu_custom_call.1} parent=1 // pred_fallthru
      _
    // Predicated region
    $region62: #{tpu_custom_call.1} parent=1 // pred_check
      _
    $region63: #{tpu_custom_call.1} parent=1 // pred_check_branch
      %2073 = sbr.rel (0) target = $region65
    $region64: #{tpu_custom_call.1} parent=1 // pred_region
      %2075 = dma.done [#allocation4], 32
    $region65: #{tpu_custom_call.1} parent=1 // pred_fallthru
      _
    %2076 = vsyncpa [#allocation3], 1
    %2077 = vsyncpa [#allocation6], 1
    %2078 = vsyncpa [#allocation4], 1

</llo_original>
